<compile_context>
chip_gen: v5e
topology: v5e:2x2
jax: 0.10.0
libtpu: 0.0.40
codegen_flags: <defaults>
</compile_context>

<pallas_src>
import functools

import jax
import jax.numpy as jnp
from jax.experimental import pallas as pl
from jax.experimental.pallas import tpu as pltpu


# ---------------------------------------------------------------------------
# Replicate the exact layer-size logic of AutoEncoder.setup_encoder/decoder.
# Returns a list of (in_features, out_features, apply_relu) for the full
# encoder-then-decoder stack, in forward-pass order.
# ---------------------------------------------------------------------------
def autoencoder_layer_sizes(encoder_input_size: int,
                            encoder_output_size: int,
                            n_layers: int,
                            first_hidden_layer_shape: str = "wide"):
    assert n_layers > 0, "The number of layers must be greater than 0"
    assert encoder_input_size > encoder_output_size
    assert not (first_hidden_layer_shape == "wide") or n_layers > 1

    encoder = []
    input_size = encoder_input_size
    current_layer = 0
    if first_hidden_layer_shape == "wide":
        output_size = 2 ** (int(encoder_input_size).bit_length() + 1)
        encoder.append((input_size, output_size, True))      # Linear + ReLU
        input_size = output_size
        current_layer += 1

    size_decrease = (input_size - encoder_output_size) // (n_layers - current_layer)
    output_size = input_size - size_decrease
    for _ in range(current_layer, n_layers - 1):
        encoder.append((input_size, output_size, True))       # Linear + ReLU
        input_size = output_size
        output_size = input_size - size_decrease
    encoder.append((input_size, encoder_output_size, False))  # last encoder Linear (no ReLU)

    decoder = []
    for i in range(n_layers - 1, -1, -1):
        e_in, e_out, _ = encoder[i]
        # decoder_i mirrors encoder_i: Linear(e_out -> e_in), ReLU except i == 0
        decoder.append((e_out, e_in, i > 0))

    return encoder + decoder


# ---------------------------------------------------------------------------
# Deterministic parameter init (PyTorch-Linear-style uniform bounds).
# Weights stored as (in, out); biases as (1, out). Kept in f32; the wrapper
# handles bf16 casting for the kernel.
# ---------------------------------------------------------------------------
def init_params(key, layer_sizes):
    params = []
    for (fan_in, fan_out, _) in layer_sizes:
        key, kw, kb = jax.random.split(key, 3)
        bound = 1.0 / (fan_in ** 0.5)
        w = jax.random.uniform(kw, (fan_in, fan_out), jnp.float32, -bound, bound)
        b = jax.random.uniform(kb, (1, fan_out), jnp.float32, -bound, bound)
        params.append((w, b))
    return params


# ---------------------------------------------------------------------------
# Wrapper-side preprocessing.
# ---------------------------------------------------------------------------
def fold_linear_pairs(params, relu_flags):
    """Fold every non-final Linear with no ReLU into the next Linear.

    (x @ W1 + b1) @ W2 + b2 == x @ (W1 @ W2) + (b1 @ W2 + b2)  -- exact.
    This collapses the 256->8->256 bottleneck into one 256->256 layer.
    """
    folded_p, folded_r = [], []
    i, n = 0, len(params)
    while i < n:
        w, b = params[i]
        r = relu_flags[i]
        while (not r) and (i < n - 1):
            w2, b2 = params[i + 1]
            w = jnp.dot(w, w2, preferred_element_type=jnp.float32)
            b = jnp.dot(b, w2, preferred_element_type=jnp.float32) + b2
            r = relu_flags[i + 1]
            i += 1
        folded_p.append((w, b))
        folded_r.append(r)
        i += 1
    return folded_p, folded_r


def pad_last_layer_out(params, lane=128):
    """Zero-pad the final layer's out-features to a multiple of `lane` so the
    output store is lane-dense. Returns (params, true_d_out)."""
    w, b = params[-1]
    d_out = w.shape[1]
    pad = (-d_out) % lane
    if pad:
        w = jnp.pad(w, ((0, 0), (0, pad)))
        b = jnp.pad(b, ((0, 0), (0, pad)))
        params = params[:-1] + [(w, b)]
    return params, d_out


def _default_block_b():
    # v5e: 128x128 MXU -> 128 rows is enough and keeps vreg pressure low.
    # v6e / v7x: 256-wide MXU -> 256 rows per tile.
    try:
        kind = jax.devices()[0].device_kind.lower()
    except Exception:  # pragma: no cover
        kind = ""
    return 128 if "v5" in kind else 256


# ---------------------------------------------------------------------------
# Pallas kernel: fused MLP (Linear [+ ReLU]) chain over one batch tile.
# refs layout: x_ref, w0, b0, w1, b1, ..., out_ref
# Weights/activations are bf16; accumulation and biases are f32.
# ---------------------------------------------------------------------------
def _mlp_kernel(relu_flags, x_ref, *refs):
    out_ref = refs[-1]
    h = x_ref[...]                       # bf16
    n = len(relu_flags)
    for li, apply_relu in enumerate(relu_flags):
        w = refs[2 * li][...]            # bf16 (in, out)
        b = refs[2 * li + 1][...]        # f32  (1, out)
        h = jnp.dot(h, w, preferred_element_type=jnp.float32) + b
        if apply_relu:
            h = jnp.maximum(h, 0.0)
        if li < n - 1:
            h = h.astype(jnp.bfloat16)   # back to the bf16 MXU path
    out_ref[...] = h.astype(out_ref.dtype)


def autoencoder_forward(x, params, relu_flags, *, block_b=None):
    if block_b is None:
        block_b = _default_block_b()

    # Fold ReLU-free Linear pairs (bottleneck), then pad the output to 128 lanes.
    params, relu_flags = fold_linear_pairs(list(params), list(relu_flags))
    params, d_out = pad_last_layer_out(params)
    d_out_padded = params[-1][0].shape[1]

    B, d_in = x.shape
    n_blocks = pl.cdiv(B, block_b)
    Bp = n_blocks * block_b
    if Bp != B:
        x = jnp.pad(x, ((0, Bp - B), (0, 0)))
    x = x.astype(jnp.bfloat16)

    in_specs = [pl.BlockSpec((block_b, d_in), lambda i: (i, 0))]
    flat_args = []
    for w, b in params:
        wb = w.astype(jnp.bfloat16)
        bf = b.astype(jnp.float32)
        in_specs.append(pl.BlockSpec(wb.shape, lambda i: (0, 0)))  # resident weight
        in_specs.append(pl.BlockSpec(bf.shape, lambda i: (0, 0)))  # resident bias
        flat_args.extend([wb, bf])

    out_spec = pl.BlockSpec((block_b, d_out_padded), lambda i: (i, 0))
    grid = (n_blocks,)

    kernel = functools.partial(_mlp_kernel, tuple(relu_flags))
    out = pl.pallas_call(
        kernel,
        grid=grid,
        in_specs=in_specs,
        out_specs=out_spec,
        out_shape=jax.ShapeDtypeStruct((Bp, d_out_padded), jnp.float32),
        compiler_params=pltpu.CompilerParams(
            dimension_semantics=("parallel",)),
    )(x, *flat_args)

    return out[:B, :d_out]


# ---------------------------------------------------------------------------
# Pure-JAX f32 reference (unfolded, unpadded) for correctness checking.
# ---------------------------------------------------------------------------
def ref_forward(x, params, relu_flags):
    h = x
    for (w, b), r in zip(params, relu_flags):
        h = jnp.dot(h, w, preferred_element_type=jnp.float32) + b
        if r:
            h = jnp.maximum(h, 0.0)
    return h


if __name__ == "__main__":
    # AutoEncoder(encoder_input_size=64, encoder_output_size=8, n_layers=2,
    #             first_hidden_layer_shape='wide')
    # -> encoder: Linear(64, 256)+ReLU, Linear(256, 8)
    # -> decoder: Linear(8, 256)+ReLU, Linear(256, 64)
    encoder_input_size = 64
    encoder_output_size = 8
    n_layers = 2

    layer_sizes = autoencoder_layer_sizes(
        encoder_input_size, encoder_output_size, n_layers, "wide")
    relu_flags = [r for (_, _, r) in layer_sizes]

    key = jax.random.PRNGKey(0)
    key, kx = jax.random.split(key)
    params = init_params(key, layer_sizes)

    # Batch big enough that the batch grid has >= 2 steps at block_b=256
    # (feeds both v7x TensorCores); still tiny in absolute terms.
    batch = 512
    x = jax.random.normal(kx, (batch, encoder_input_size), jnp.float32)

    out = autoencoder_forward(x, params, relu_flags)
    out = jax.block_until_ready(out)

    expected = ref_forward(x, params, relu_flags)
    assert out.shape == (batch, encoder_input_size), out.shape
    assert jnp.allclose(out, expected, rtol=2e-2, atol=2e-2), (
        float(jnp.max(jnp.abs(out - expected))))

    print("KERNEL_OK")
</pallas_src>

<mosaic_0001>
module attributes {stable_mosaic.version = 11 : i64} {
  func.func @_mlp_kernel(%arg0: i32, %arg1: memref<256x64xbf16, #tpu.memory_space<vmem>>, %arg2: memref<64x256xbf16, #tpu.memory_space<vmem>>, %arg3: memref<1x256xf32, #tpu.memory_space<vmem>>, %arg4: memref<256x256xbf16, #tpu.memory_space<vmem>>, %arg5: memref<1x256xf32, #tpu.memory_space<vmem>>, %arg6: memref<256x128xbf16, #tpu.memory_space<vmem>>, %arg7: memref<1x128xf32, #tpu.memory_space<vmem>>, %arg8: memref<256x128xf32, #tpu.memory_space<vmem>>) attributes {dimension_semantics = [#tpu.dimension_semantics<parallel>], iteration_bounds = array<i64: 2>, scalar_prefetch = 0 : i64, scratch_operands = 0 : i64, tpu.core_type = #tpu.core_type<tc>, window_params = [{transform_indices = @transform_0, window_bounds = array<i64: 256, 64>}, {pipeline_mode = #tpu.pipeline_mode<synchronous>, transform_indices = @transform_1, window_bounds = array<i64: 64, 256>}, {pipeline_mode = #tpu.pipeline_mode<synchronous>, transform_indices = @transform_2, window_bounds = array<i64: 1, 256>}, {pipeline_mode = #tpu.pipeline_mode<synchronous>, transform_indices = @transform_3, window_bounds = array<i64: 256, 256>}, {pipeline_mode = #tpu.pipeline_mode<synchronous>, transform_indices = @transform_4, window_bounds = array<i64: 1, 256>}, {pipeline_mode = #tpu.pipeline_mode<synchronous>, transform_indices = @transform_5, window_bounds = array<i64: 256, 128>}, {pipeline_mode = #tpu.pipeline_mode<synchronous>, transform_indices = @transform_6, window_bounds = array<i64: 1, 128>}, {transform_indices = @transform_7, window_bounds = array<i64: 256, 128>}]} {
    %c0 = arith.constant 0 : index
    %c0_0 = arith.constant 0 : index
    %0 = vector.load %arg1[%c0, %c0_0] : memref<256x64xbf16, #tpu.memory_space<vmem>>, vector<256x64xbf16>
    %c0_1 = arith.constant 0 : index
    %c0_2 = arith.constant 0 : index
    %1 = vector.load %arg2[%c0_1, %c0_2] : memref<64x256xbf16, #tpu.memory_space<vmem>>, vector<64x256xbf16>
    %c0_3 = arith.constant 0 : index
    %c0_4 = arith.constant 0 : index
    %2 = vector.load %arg3[%c0_3, %c0_4] : memref<1x256xf32, #tpu.memory_space<vmem>>, vector<1x256xf32>
    %cst = arith.constant dense<0.000000e+00> : vector<256x256xf32>
    %3 = tpu.matmul %0, %1, %cst {dimension_numbers = #tpu.dot_dimension_numbers<[1], [0], [0], [1], [0, 0, 1, 1], [], []>} : vector<256x64xbf16>, vector<64x256xbf16>, vector<256x256xf32> -> vector<256x256xf32>
    %4 = vector.broadcast %2 : vector<1x256xf32> to vector<256x256xf32>
    %5 = arith.addf %3, %4 : vector<256x256xf32>
    %cst_5 = arith.constant 0.000000e+00 : f32
    %6 = vector.broadcast %cst_5 : f32 to vector<256x256xf32>
    %7 = arith.maximumf %5, %6 : vector<256x256xf32>
    %8 = arith.truncf %7 : vector<256x256xf32> to vector<256x256xbf16>
    %c0_6 = arith.constant 0 : index
    %c0_7 = arith.constant 0 : index
    %9 = vector.load %arg4[%c0_6, %c0_7] : memref<256x256xbf16, #tpu.memory_space<vmem>>, vector<256x256xbf16>
    %c0_8 = arith.constant 0 : index
    %c0_9 = arith.constant 0 : index
    %10 = vector.load %arg5[%c0_8, %c0_9] : memref<1x256xf32, #tpu.memory_space<vmem>>, vector<1x256xf32>
    %cst_10 = arith.constant dense<0.000000e+00> : vector<256x256xf32>
    %11 = tpu.matmul %8, %9, %cst_10 {dimension_numbers = #tpu.dot_dimension_numbers<[1], [0], [0], [1], [0, 0, 1, 1], [], []>} : vector<256x256xbf16>, vector<256x256xbf16>, vector<256x256xf32> -> vector<256x256xf32>
    %12 = vector.broadcast %10 : vector<1x256xf32> to vector<256x256xf32>
    %13 = arith.addf %11, %12 : vector<256x256xf32>
    %cst_11 = arith.constant 0.000000e+00 : f32
    %14 = vector.broadcast %cst_11 : f32 to vector<256x256xf32>
    %15 = arith.maximumf %13, %14 : vector<256x256xf32>
    %16 = arith.truncf %15 : vector<256x256xf32> to vector<256x256xbf16>
    %c0_12 = arith.constant 0 : index
    %c0_13 = arith.constant 0 : index
    %17 = vector.load %arg6[%c0_12, %c0_13] : memref<256x128xbf16, #tpu.memory_space<vmem>>, vector<256x128xbf16>
    %c0_14 = arith.constant 0 : index
    %c0_15 = arith.constant 0 : index
    %18 = vector.load %arg7[%c0_14, %c0_15] : memref<1x128xf32, #tpu.memory_space<vmem>>, vector<1x128xf32>
    %cst_16 = arith.constant dense<0.000000e+00> : vector<256x128xf32>
    %19 = tpu.matmul %16, %17, %cst_16 {dimension_numbers = #tpu.dot_dimension_numbers<[1], [0], [0], [1], [0, 0, 1, 1], [], []>} : vector<256x256xbf16>, vector<256x128xbf16>, vector<256x128xf32> -> vector<256x128xf32>
    %20 = vector.broadcast %18 : vector<1x128xf32> to vector<256x128xf32>
    %21 = arith.addf %19, %20 : vector<256x128xf32>
    %c0_17 = arith.constant 0 : index
    %c0_18 = arith.constant 0 : index
    %22 = vector.load %arg8[%c0_17, %c0_18] : memref<256x128xf32, #tpu.memory_space<vmem>>, vector<256x128xf32>
    tpu.vector_store %arg8[%c0_17, %c0_18], %21 {strides = array<i32>} : memref<256x128xf32, #tpu.memory_space<vmem>>, vector<256x128xf32>,
    return
  }
  func.func @transform_0(%arg0: i32) -> (i32, i32) {
    %c0_i32 = arith.constant 0 : i32
    %c0_i32_0 = arith.constant 0 : i32
    return %arg0, %c0_i32 : i32, i32
  }
  func.func @transform_1(%arg0: i32) -> (i32, i32) {
    %c0_i32 = arith.constant 0 : i32
    %c0_i32_0 = arith.constant 0 : i32
    %c0_i32_1 = arith.constant 0 : i32
    return %c0_i32, %c0_i32_0 : i32, i32
  }
  func.func @transform_2(%arg0: i32) -> (i32, i32) {
    %c0_i32 = arith.constant 0 : i32
    %c0_i32_0 = arith.constant 0 : i32
    %c0_i32_1 = arith.constant 0 : i32
    return %c0_i32, %c0_i32_0 : i32, i32
  }
  func.func @transform_3(%arg0: i32) -> (i32, i32) {
    %c0_i32 = arith.constant 0 : i32
    %c0_i32_0 = arith.constant 0 : i32
    %c0_i32_1 = arith.constant 0 : i32
    return %c0_i32, %c0_i32_0 : i32, i32
  }
  func.func @transform_4(%arg0: i32) -> (i32, i32) {
    %c0_i32 = arith.constant 0 : i32
    %c0_i32_0 = arith.constant 0 : i32
    %c0_i32_1 = arith.constant 0 : i32
    return %c0_i32, %c0_i32_0 : i32, i32
  }
  func.func @transform_5(%arg0: i32) -> (i32, i32) {
    %c0_i32 = arith.constant 0 : i32
    %c0_i32_0 = arith.constant 0 : i32
    %c0_i32_1 = arith.constant 0 : i32
    return %c0_i32, %c0_i32_0 : i32, i32
  }
  func.func @transform_6(%arg0: i32) -> (i32, i32) {
    %c0_i32 = arith.constant 0 : i32
    %c0_i32_0 = arith.constant 0 : i32
    %c0_i32_1 = arith.constant 0 : i32
    return %c0_i32, %c0_i32_0 : i32, i32
  }
  func.func @transform_7(%arg0: i32) -> (i32, i32) {
    %c0_i32 = arith.constant 0 : i32
    %c0_i32_0 = arith.constant 0 : i32
    return %arg0, %c0_i32 : i32, i32
  }
}

</mosaic_0001>

<llo_original>
// kernel: tpu_custom_call.1
$region0: #{tpu_custom_call.1}
  #allocation0 [shape = 'u32[]', space=smem, size = 0x4, offset = 0x4, fixed_abs, tag = 'smem constant byte address 0x4 - core index']
  #allocation1 [shape = 'u32[72,128]{1,0:T(1,128)}', space=vmem, size = 0x9000, scoped, tag = 'internal scratch']
  %s0 = inlined_call_operand.vmem [shape: bf16[512,64], index: 0, kind: input, shape index: {}]
  %s1 = inlined_call_operand.hbm [shape: bf16[64,256], index: 1, kind: input, shape index: {}]
  %s2 = inlined_call_operand.vmem [shape: f32[1,256], index: 2, kind: input, shape index: {}]
  %s3 = inlined_call_operand.vmem [shape: bf16[256,256], index: 3, kind: input, shape index: {}]
  %s4 = inlined_call_operand.hbm [shape: f32[1,256], index: 4, kind: input, shape index: {}]
  %s5 = inlined_call_operand.vmem [shape: bf16[256,128], index: 5, kind: input, shape index: {}]
  %s6 = inlined_call_operand.vmem [shape: f32[1,128], index: 6, kind: input, shape index: {}]
  %s7 = inlined_call_operand.hbm [shape: f32[512,128], index: 7, kind: output, shape index: {}]
  %s8 = sld [smem:[#allocation0]]
  $region69: #{tpu_custom_call.1} parent=0
    _
  %s10 = ssub.s32 1, %s8
  %s11 = scalar_select 0, %s10, %s8
  $region1: #{tpu_custom_call.1} parent=0
    #allocation2 [shape = 'u8[32768]{0}', space=vmem, size = 0x8000, scoped, tag = 'input window, operand 1, single buffered']
    #allocation3 [shape = 's32[2]{0}', space=sflag, size = 0x8, scoped, tag = 'scoped memory for tpu_custom_call.1']
    #allocation4 [shape = 's32[2]{0}', space=sflag, size = 0x8, scoped, tag = 'scoped memory for tpu_custom_call.1']
    #allocation5 [shape = 'u8[1024]{0}', space=vmem, size = 0x400, scoped, tag = 'input window, operand 4, single buffered']
    #allocation6 [shape = 's32[1]{0}', space=sflag, size = 0x4, scoped, tag = 'scoped memory for tpu_custom_call.1']
    #allocation7 [shape = 'u8[262144]{0}', space=vmem, size = 0x40000, scoped, tag = 'output window, operand 0']
    %12 = vsyncpa [#allocation3], 0
    %13 = vsyncpa [#allocation6], 0
    %14 = vsyncpa [#allocation4], 0
    %s15 = scalar_lea.sflag [#allocation4], 1
    %16 = vsyncpa %s15, 0
    loop: start=0, step=1, limit=4
    $region2: #{tpu_custom_call.1} parent=1 // loop_pre_header
      _
    $region3: #{tpu_custom_call.1} parent=1 // loop_header
      %s18 = sphi 0, %s22
      %p19 = scmp.ge.s32.totalorder %s18, 4
      %s28 = sphi 0, %s30
      %s31 = sphi 0, %s28
      %s32 = sphi 0, %s31
      %s48 = sphi 0, %s32
      %s52 = sphi 0, %s52
      %s54 = sphi 0, %s52
      %s55 = sphi 0, %s54
      %s69 = sphi 0, %s55
      %s73 = sphi 0, %s73
      %s75 = sphi 0, %s73
      %s76 = sphi 0, %s75
      %s90 = sphi 0, %s76
      %s94 = sphi 0, %s94
      %s96 = sphi 0, %s94
      %s97 = sphi 0, %s96
      %s111 = sphi 0, %s97
      %s115 = sphi 0, %s115
      %s117 = sphi 0, %s115
      %s118 = sphi 0, %s117
      %s132 = sphi 0, %s118
      %s136 = sphi 0, %s136
      %s138 = sphi 0, %s136
      %s139 = sphi 0, %s138
      %s153 = sphi 0, %s139
      %s157 = sphi 0, %s157
      %s159 = sphi 0, %s157
      %s160 = sphi 0, %s159
      %s174 = sphi 0, %s160
      %s180 = sphi 0, %s182
      %s183 = sphi 0, %s180
      %s184 = sphi 0, %s183
      %s200 = sphi 0, %s184
    $region4: #{tpu_custom_call.1} parent=1 // loop_header_branch
      %21 = sbr.rel (%p19) target = $region8
    $region5: #{tpu_custom_call.1} parent=1 // loop_body
      %s23 = ssub.s32 %s18, 1
      %s24 = ssub.s32 %s18, 2
      %s25 = sadd.s32 %s18, 1
      %s26 = ssub.s32 %s18, %s25
      %p27 = scmp.eq.s32.totalorder %s26, 0
      %s29 = sadd.s32 %s28, 1
      %s30 = scalar_select %p27, %s28, %s29
      %p33 = pneg %p27
      %p34 = scmp.eq.s32.totalorder %s18, 1
      %p35 = por %p33, %p34
      %p36 = scmp.ne.s32.totalorder %s28, %s31
      %p37 = scmp.eq.s32.totalorder %s18, 0
      %p38 = por %p36, %p37
      %p39 = scmp.ne.s32.totalorder %s28, %s31
      %p40 = scmp.eq.s32.totalorder %s23, 1
      %p41 = por %p39, %p40
      %p42 = scmp.ne.s32.totalorder %s31, %s32
      %p43 = scmp.eq.s32.totalorder %s23, 0
      %p44 = por %p42, %p43
      %p45 = scmp.ne.s32.totalorder %s31, %s32
      %p46 = scmp.eq.s32.totalorder %s24, 1
      %p47 = por %p45, %p46
      %p49 = scmp.ne.s32.totalorder %s32, %s48
      %p50 = scmp.eq.s32.totalorder %s24, 0
      %p51 = por %p49, %p50
      %s53 = sadd.s32 %s52, 1
      %p56 = scmp.eq.s32.totalorder %s18, 1
      %p57 = scmp.ne.s32.totalorder %s52, %s54
      %p58 = scmp.eq.s32.totalorder %s18, 0
      %p59 = por %p57, %p58
      %p60 = scmp.ne.s32.totalorder %s52, %s54
      %p61 = scmp.eq.s32.totalorder %s23, 1
      %p62 = por %p60, %p61
      %p63 = scmp.ne.s32.totalorder %s54, %s55
      %p64 = scmp.eq.s32.totalorder %s23, 0
      %p65 = por %p63, %p64
      %p66 = scmp.ne.s32.totalorder %s54, %s55
      %p67 = scmp.eq.s32.totalorder %s24, 1
      %p68 = por %p66, %p67
      %p70 = scmp.ne.s32.totalorder %s55, %s69
      %p71 = scmp.eq.s32.totalorder %s24, 0
      %p72 = por %p70, %p71
      %s74 = sadd.s32 %s73, 1
      %p77 = scmp.eq.s32.totalorder %s18, 1
      %p78 = scmp.ne.s32.totalorder %s73, %s75
      %p79 = scmp.eq.s32.totalorder %s18, 0
      %p80 = por %p78, %p79
      %p81 = scmp.ne.s32.totalorder %s73, %s75
      %p82 = scmp.eq.s32.totalorder %s23, 1
      %p83 = por %p81, %p82
      %p84 = scmp.ne.s32.totalorder %s75, %s76
      %p85 = scmp.eq.s32.totalorder %s23, 0
      %p86 = por %p84, %p85
      %p87 = scmp.ne.s32.totalorder %s75, %s76
      %p88 = scmp.eq.s32.totalorder %s24, 1
      %p89 = por %p87, %p88
      %p91 = scmp.ne.s32.totalorder %s76, %s90
      %p92 = scmp.eq.s32.totalorder %s24, 0
      %p93 = por %p91, %p92
      %s95 = sadd.s32 %s94, 1
      %p98 = scmp.eq.s32.totalorder %s18, 1
      %p99 = scmp.ne.s32.totalorder %s94, %s96
      %p100 = scmp.eq.s32.totalorder %s18, 0
      %p101 = por %p99, %p100
      %p102 = scmp.ne.s32.totalorder %s94, %s96
      %p103 = scmp.eq.s32.totalorder %s23, 1
      %p104 = por %p102, %p103
      %p105 = scmp.ne.s32.totalorder %s96, %s97
      %p106 = scmp.eq.s32.totalorder %s23, 0
      %p107 = por %p105, %p106
      %p108 = scmp.ne.s32.totalorder %s96, %s97
      %p109 = scmp.eq.s32.totalorder %s24, 1
      %p110 = por %p108, %p109
      %p112 = scmp.ne.s32.totalorder %s97, %s111
      %p113 = scmp.eq.s32.totalorder %s24, 0
      %p114 = por %p112, %p113
      %s116 = sadd.s32 %s115, 1
      %p119 = scmp.eq.s32.totalorder %s18, 1
      %p120 = scmp.ne.s32.totalorder %s115, %s117
      %p121 = scmp.eq.s32.totalorder %s18, 0
      %p122 = por %p120, %p121
      %p123 = scmp.ne.s32.totalorder %s115, %s117
      %p124 = scmp.eq.s32.totalorder %s23, 1
      %p125 = por %p123, %p124
      %p126 = scmp.ne.s32.totalorder %s117, %s118
      %p127 = scmp.eq.s32.totalorder %s23, 0
      %p128 = por %p126, %p127
      %p129 = scmp.ne.s32.totalorder %s117, %s118
      %p130 = scmp.eq.s32.totalorder %s24, 1
      %p131 = por %p129, %p130
      %p133 = scmp.ne.s32.totalorder %s118, %s132
      %p134 = scmp.eq.s32.totalorder %s24, 0
      %p135 = por %p133, %p134
      %s137 = sadd.s32 %s136, 1
      %p140 = scmp.eq.s32.totalorder %s18, 1
      %p141 = scmp.ne.s32.totalorder %s136, %s138
      %p142 = scmp.eq.s32.totalorder %s18, 0
      %p143 = por %p141, %p142
      %p144 = scmp.ne.s32.totalorder %s136, %s138
      %p145 = scmp.eq.s32.totalorder %s23, 1
      %p146 = por %p144, %p145
      %p147 = scmp.ne.s32.totalorder %s138, %s139
      %p148 = scmp.eq.s32.totalorder %s23, 0
      %p149 = por %p147, %p148
      %p150 = scmp.ne.s32.totalorder %s138, %s139
      %p151 = scmp.eq.s32.totalorder %s24, 1
      %p152 = por %p150, %p151
      %p154 = scmp.ne.s32.totalorder %s139, %s153
      %p155 = scmp.eq.s32.totalorder %s24, 0
      %p156 = por %p154, %p155
      %s158 = sadd.s32 %s157, 1
      %p161 = scmp.eq.s32.totalorder %s18, 1
      %p162 = scmp.ne.s32.totalorder %s157, %s159
      %p163 = scmp.eq.s32.totalorder %s18, 0
      %p164 = por %p162, %p163
      %p165 = scmp.ne.s32.totalorder %s157, %s159
      %p166 = scmp.eq.s32.totalorder %s23, 1
      %p167 = por %p165, %p166
      %p168 = scmp.ne.s32.totalorder %s159, %s160
      %p169 = scmp.eq.s32.totalorder %s23, 0
      %p170 = por %p168, %p169
      %p171 = scmp.ne.s32.totalorder %s159, %s160
      %p172 = scmp.eq.s32.totalorder %s24, 1
      %p173 = por %p171, %p172
      %p175 = scmp.ne.s32.totalorder %s160, %s174
      %p176 = scmp.eq.s32.totalorder %s24, 0
      %p177 = por %p175, %p176
      %s178 = ssub.s32 %s18, %s25
      %p179 = scmp.eq.s32.totalorder %s178, 0
      %s181 = sadd.s32 %s180, 1
      %s182 = scalar_select %p179, %s180, %s181
      %p185 = pneg %p179
      %p186 = scmp.eq.s32.totalorder %s18, 1
      %p187 = por %p185, %p186
      %p188 = scmp.ne.s32.totalorder %s180, %s183
      %p189 = scmp.eq.s32.totalorder %s18, 0
      %p190 = por %p188, %p189
      %p191 = scmp.ne.s32.totalorder %s180, %s183
      %p192 = scmp.eq.s32.totalorder %s23, 1
      %p193 = por %p191, %p192
      %p194 = scmp.ne.s32.totalorder %s183, %s184
      %p195 = scmp.eq.s32.totalorder %s23, 0
      %p196 = por %p194, %p195
      %p197 = scmp.ne.s32.totalorder %s183, %s184
      %p198 = scmp.eq.s32.totalorder %s24, 1
      %p199 = por %p197, %p198
      %p201 = scmp.ne.s32.totalorder %s184, %s200
      %p202 = scmp.eq.s32.totalorder %s24, 0
      %p203 = por %p201, %p202
      %p204 = scmp.le.s32.totalorder 1, %s18
      %p205 = scmp.lt.s32.totalorder %s18, 3
      %p206 = pnand %p204, %p205
      %p207 = pneg %p206
      // Predicated region
      $region9: #{tpu_custom_call.1} parent=5 // pred_check
        _
      $region10: #{tpu_custom_call.1} parent=5 // pred_check_branch
        %209 = sbr.rel (%p206) target = $region12
      $region11: #{tpu_custom_call.1} parent=5 // pred_region
        %s210 = ssub.s32 %s18, 1
        // Predicated region
        $region13: #{tpu_custom_call.1} parent=11 // pred_check
          %p211 = pneg %p65
        $region14: #{tpu_custom_call.1} parent=11 // pred_check_branch
          %213 = sbr.rel (%p211) target = $region16
        $region15: #{tpu_custom_call.1} parent=11 // pred_region
          %215 = vsyncadd [#allocation3], 0
          %s216 = sshll.u32 %s1, 4
          %s217 = int_to_ptr.hbm [resolvable:$true] %s216
          %s218 = sshll.u32 [#allocation2], 4
          %s219 = int_to_ptr.vmem [resolvable:$true] %s218
          %224 = dma.hbm_to_vmem [thread:$0]  %s217, 1024, %s219, [#allocation3], 128, 128, 8
        $region16: #{tpu_custom_call.1} parent=11 // pred_fallthru
          _
        // Predicated region
        $region17: #{tpu_custom_call.1} parent=11 // pred_check
          %p225 = pneg %p86
        $region18: #{tpu_custom_call.1} parent=11 // pred_check_branch
          %227 = sbr.rel (%p225) target = $region20
        $region19: #{tpu_custom_call.1} parent=11 // pred_region
          _
        $region20: #{tpu_custom_call.1} parent=11 // pred_fallthru
          _
        // Predicated region
        $region21: #{tpu_custom_call.1} parent=11 // pred_check
          %p228 = pneg %p107
        $region22: #{tpu_custom_call.1} parent=11 // pred_check_branch
          %230 = sbr.rel (%p228) target = $region24
        $region23: #{tpu_custom_call.1} parent=11 // pred_region
          _
        $region24: #{tpu_custom_call.1} parent=11 // pred_fallthru
          _
        // Predicated region
        $region25: #{tpu_custom_call.1} parent=11 // pred_check
          %p231 = pneg %p128
        $region26: #{tpu_custom_call.1} parent=11 // pred_check_branch
          %233 = sbr.rel (%p231) target = $region28
        $region27: #{tpu_custom_call.1} parent=11 // pred_region
          %235 = vsyncadd [#allocation6], 0
          %s237 = sshll.u32 %s4, 4
          %s238 = int_to_ptr.hbm [resolvable:$true] %s237
          %s239 = sshll.u32 [#allocation5], 4
          %s240 = int_to_ptr.vmem [resolvable:$true] %s239
          %242 = dma.hbm_to_vmem [thread:$0]  %s238, 32, %s240, [#allocation6]
        $region28: #{tpu_custom_call.1} parent=11 // pred_fallthru
          _
        // Predicated region
        $region29: #{tpu_custom_call.1} parent=11 // pred_check
          %p243 = pneg %p149
        $region30: #{tpu_custom_call.1} parent=11 // pred_check_branch
          %245 = sbr.rel (%p243) target = $region32
        $region31: #{tpu_custom_call.1} parent=11 // pred_region
          _
        $region32: #{tpu_custom_call.1} parent=11 // pred_fallthru
          _
        // Predicated region
        $region33: #{tpu_custom_call.1} parent=11 // pred_check
          %p246 = pneg %p170
        $region34: #{tpu_custom_call.1} parent=11 // pred_check_branch
          %248 = sbr.rel (%p246) target = $region36
        $region35: #{tpu_custom_call.1} parent=11 // pred_region
          _
        $region36: #{tpu_custom_call.1} parent=11 // pred_fallthru
          _
      $region12: #{tpu_custom_call.1} parent=5 // pred_fallthru
        _
      %p249 = scmp.lt.s32.totalorder %s18, 2
      // Predicated region
      $region37: #{tpu_custom_call.1} parent=5 // pred_check
        %p250 = pneg %p249
      $region38: #{tpu_custom_call.1} parent=5 // pred_check_branch
        %252 = sbr.rel (%p250) target = $region40
      $region39: #{tpu_custom_call.1} parent=5 // pred_region
        // Predicated region
        $region41: #{tpu_custom_call.1} parent=39 // pred_check
          %p253 = pneg %p38
        $region42: #{tpu_custom_call.1} parent=39 // pred_check_branch
          %255 = sbr.rel (%p253) target = $region44
        $region43: #{tpu_custom_call.1} parent=39 // pred_region
          %s256 = smul.u32 32, %s18
          %p257 = scmp.lt.s32.totalorder %s256, 63
          %s258 = scalar_select %p257, %s256, 63
          %s259 = smul.addr %s258, 4
          %s260 = scalar_lea.vmem %s0, %s259
          %s261 = smul.u32 32, %s18
        $region44: #{tpu_custom_call.1} parent=39 // pred_fallthru
          _
      $region40: #{tpu_custom_call.1} parent=5 // pred_fallthru
        _
      %p262 = scmp.le.s32.totalorder 1, %s18
      %p263 = scmp.lt.s32.totalorder %s18, 3
      %p264 = pnand %p262, %p263
      %p265 = pneg %p264
      // Predicated region
      $region45: #{tpu_custom_call.1} parent=5 // pred_check
        _
      $region46: #{tpu_custom_call.1} parent=5 // pred_check_branch
        %267 = sbr.rel (%p264) target = $region48
      $region47: #{tpu_custom_call.1} parent=5 // pred_region
        %s268 = ssub.s32 %s18, 1
        // Predicated region
        $region49: #{tpu_custom_call.1} parent=47 // pred_check
          %p269 = pneg %p65
        $region50: #{tpu_custom_call.1} parent=47 // pred_check_branch
          %271 = sbr.rel (%p269) target = $region52
        $region51: #{tpu_custom_call.1} parent=47 // pred_region
          %273 = dma.done [#allocation3], 1024
        $region52: #{tpu_custom_call.1} parent=47 // pred_fallthru
          _
        // Predicated region
        $region53: #{tpu_custom_call.1} parent=47 // pred_check
          %p274 = pneg %p128
        $region54: #{tpu_custom_call.1} parent=47 // pred_check_branch
          %276 = sbr.rel (%p274) target = $region56
        $region55: #{tpu_custom_call.1} parent=47 // pred_region
          %278 = dma.done [#allocation6], 32
        $region56: #{tpu_custom_call.1} parent=47 // pred_fallthru
          _
        %s279 = smul.u32 32, %s23
        %p280 = scmp.lt.s32.totalorder %s279, 63
        %s281 = scalar_select %p280, %s279, 63
        %s282 = smul.addr %s281, 4
        %s283 = scalar_lea.vmem %s0, %s282
        %p284 = pneg %p44
        %p285 = pneg %p41
        %p286 = pneg %p65
        %p287 = pneg %p62
        %p288 = pneg %p86
        %p289 = pneg %p83
        %p290 = pneg %p107
        %p291 = pneg %p104
        %p292 = pneg %p128
        %p293 = pneg %p125
        %p294 = pneg %p149
        %p295 = pneg %p146
        %p296 = pneg %p170
        %p297 = pneg %p167
        %p298 = pneg %p196
        %p299 = pneg %p193
        %s300 = sand.u32 %s183, 1
        %s301 = scalar_lea.sflag [#allocation4], %s300
        %s302 = sand.u32 %s183, 1
        %s303 = smul.addr %s302, 256
        %s304 = scalar_lea.vmem [#allocation7], %s303
        %s305 = smul.u32 32, %s23
        %p306 = scmp.lt.s32.totalorder %s305, 63
        %s307 = scalar_select %p306, %s305, 63
        %s308 = smul.addr %s307, 4
        %s309 = scalar_lea.vmem %s0, %s308
        %s310 = smul.u32 32, %s23
        %s311 = smul.u32 32, %s23
        %v313 = vld [vmem:[%s309] sm:$0xf]
        %v314 = vld [vmem:[%s309 + $0x4] sm:$0xf]
        %v315 = vld [vmem:[%s309 + $0x8] sm:$0xf]
        %v316 = vld [vmem:[%s309 + $0xc] sm:$0xf]
        %v317 = vld [vmem:[%s309 + $0x10] sm:$0xf]
        %v318 = vld [vmem:[%s309 + $0x14] sm:$0xf]
        %v319 = vld [vmem:[%s309 + $0x18] sm:$0xf]
        %v320 = vld [vmem:[%s309 + $0x1c] sm:$0xf]
        %v321 = vld [vmem:[%s309 + $0x20] sm:$0xf]
        %v322 = vld [vmem:[%s309 + $0x24] sm:$0xf]
        %v323 = vld [vmem:[%s309 + $0x28] sm:$0xf]
        %v324 = vld [vmem:[%s309 + $0x2c] sm:$0xf]
        %v325 = vld [vmem:[%s309 + $0x30] sm:$0xf]
        %v326 = vld [vmem:[%s309 + $0x34] sm:$0xf]
        %v327 = vld [vmem:[%s309 + $0x38] sm:$0xf]
        %v328 = vld [vmem:[%s309 + $0x3c] sm:$0xf]
        %v329 = vld [vmem:[%s309 + $0x40] sm:$0xf]
        %v330 = vld [vmem:[%s309 + $0x44] sm:$0xf]
        %v331 = vld [vmem:[%s309 + $0x48] sm:$0xf]
        %v332 = vld [vmem:[%s309 + $0x4c] sm:$0xf]
        %v333 = vld [vmem:[%s309 + $0x50] sm:$0xf]
        %v334 = vld [vmem:[%s309 + $0x54] sm:$0xf]
        %v335 = vld [vmem:[%s309 + $0x58] sm:$0xf]
        %v336 = vld [vmem:[%s309 + $0x5c] sm:$0xf]
        %v337 = vld [vmem:[%s309 + $0x60] sm:$0xf]
        %v338 = vld [vmem:[%s309 + $0x64] sm:$0xf]
        %v339 = vld [vmem:[%s309 + $0x68] sm:$0xf]
        %v340 = vld [vmem:[%s309 + $0x6c] sm:$0xf]
        %v341 = vld [vmem:[%s309 + $0x70] sm:$0xf]
        %v342 = vld [vmem:[%s309 + $0x74] sm:$0xf]
        %v343 = vld [vmem:[%s309 + $0x78] sm:$0xf]
        %v344 = vld [vmem:[%s309 + $0x7c] sm:$0xf]
        %v345 = vld [vmem:[#allocation2] sm:$0xff]
        %v346 = vld [vmem:[#allocation2 + $0x8] sm:$0xff]
        %v347 = vld [vmem:[#allocation2 + $0x10] sm:$0xff]
        %v348 = vld [vmem:[#allocation2 + $0x18] sm:$0xff]
        %v349 = vld [vmem:[#allocation2 + $0x20] sm:$0xff]
        %v350 = vld [vmem:[#allocation2 + $0x28] sm:$0xff]
        %v351 = vld [vmem:[#allocation2 + $0x30] sm:$0xff]
        %v352 = vld [vmem:[#allocation2 + $0x38] sm:$0xff]
        %v353 = vld [vmem:[%s2] sm:$0x3]
        %v355 = vperm.slane %v353, 0
        %v356 = vperm.slane %v353, 1
        %v391 = vunpack.c.l.b16 %v313
        %v392 = vunpack.c.l.b16 %v314
        %v393 = vunpack.c.l.b16 %v315
        %v394 = vunpack.c.l.b16 %v316
        %v395 = vunpack.c.l.b16 %v317
        %v396 = vunpack.c.l.b16 %v318
        %v397 = vunpack.c.l.b16 %v319
        %v398 = vunpack.c.l.b16 %v320
        %v399 = vunpack.c.l.b16 %v321
        %v400 = vunpack.c.l.b16 %v322
        %v401 = vunpack.c.l.b16 %v323
        %v402 = vunpack.c.l.b16 %v324
        %v403 = vunpack.c.l.b16 %v325
        %v404 = vunpack.c.l.b16 %v326
        %v405 = vunpack.c.l.b16 %v327
        %v406 = vunpack.c.l.b16 %v328
        %v407 = vunpack.c.l.b16 %v329
        %v408 = vunpack.c.l.b16 %v330
        %v409 = vunpack.c.l.b16 %v331
        %v410 = vunpack.c.l.b16 %v332
        %v411 = vunpack.c.l.b16 %v333
        %v412 = vunpack.c.l.b16 %v334
        %v413 = vunpack.c.l.b16 %v335
        %v414 = vunpack.c.l.b16 %v336
        %v415 = vunpack.c.l.b16 %v337
        %v416 = vunpack.c.l.b16 %v338
        %v417 = vunpack.c.l.b16 %v339
        %v418 = vunpack.c.l.b16 %v340
        %v419 = vunpack.c.l.b16 %v341
        %v420 = vunpack.c.l.b16 %v342
        %v421 = vunpack.c.l.b16 %v343
        %v422 = vunpack.c.l.b16 %v344
        %v423 = vpack.c.b16 %v392, %v391
        %v424 = vpack.c.b16 %v394, %v393
        %v425 = vpack.c.b16 %v396, %v395
        %v426 = vpack.c.b16 %v398, %v397
        %v427 = vpack.c.b16 %v400, %v399
        %v428 = vpack.c.b16 %v402, %v401
        %v429 = vpack.c.b16 %v404, %v403
        %v430 = vpack.c.b16 %v406, %v405
        %v431 = vpack.c.b16 %v408, %v407
        %v432 = vpack.c.b16 %v410, %v409
        %v433 = vpack.c.b16 %v412, %v411
        %v434 = vpack.c.b16 %v414, %v413
        %v435 = vpack.c.b16 %v416, %v415
        %v436 = vpack.c.b16 %v418, %v417
        %v437 = vpack.c.b16 %v420, %v419
        %v438 = vpack.c.b16 %v422, %v421
        %v447 = vunpack.c.l.b16 %v345
        %v448 = vunpack.c.h.b16 %v345
        %v449 = vunpack.c.l.b16 %v346
        %v450 = vunpack.c.h.b16 %v346
        %v451 = vunpack.c.l.b16 %v347
        %v452 = vunpack.c.h.b16 %v347
        %v453 = vunpack.c.l.b16 %v348
        %v454 = vunpack.c.h.b16 %v348
        %v455 = vunpack.c.l.b16 %v349
        %v456 = vunpack.c.h.b16 %v349
        %v457 = vunpack.c.l.b16 %v350
        %v458 = vunpack.c.h.b16 %v350
        %v459 = vunpack.c.l.b16 %v351
        %v460 = vunpack.c.h.b16 %v351
        %v461 = vunpack.c.l.b16 %v352
        %v462 = vunpack.c.h.b16 %v352
        %v463 = vpack.c.b16 %v449, %v447
        %v464 = vpack.c.b16 %v450, %v448
        %v465 = vpack.c.b16 %v453, %v451
        %v466 = vpack.c.b16 %v454, %v452
        %v467 = vpack.c.b16 %v457, %v455
        %v468 = vpack.c.b16 %v458, %v456
        %v469 = vpack.c.b16 %v461, %v459
        %v470 = vpack.c.b16 %v462, %v460
        %vm479 = vcmask 523264
        %v481 = vsel %vm479, %v423, 0
        %v484 = vsel %vm479, %v424, 0
        %v487 = vsel %vm479, %v425, 0
        %v490 = vsel %vm479, %v426, 0
        %v493 = vsel %vm479, %v427, 0
        %v496 = vsel %vm479, %v428, 0
        %v499 = vsel %vm479, %v429, 0
        %v502 = vsel %vm479, %v430, 0
        %v505 = vsel %vm479, %v431, 0
        %v508 = vsel %vm479, %v432, 0
        %v511 = vsel %vm479, %v433, 0
        %v514 = vsel %vm479, %v434, 0
        %v517 = vsel %vm479, %v435, 0
        %v520 = vsel %vm479, %v436, 0
        %v523 = vsel %vm479, %v437, 0
        %v526 = vsel %vm479, %v438, 0
        %528 = vmatpush.bf16.msra.mxu0 0
        %529 = vmatpush.bf16.msra.mxu0 0
        %530 = vmatpush.bf16.msra.mxu0 0
        %531 = vmatpush.bf16.msra.mxu0 0
        %532 = vmatpush.bf16.msra.mxu0 %v469
        %533 = vmatpush.bf16.msra.mxu0 %v467
        %534 = vmatpush.bf16.msra.mxu0 %v465
        %535 = vmatpush.bf16.msra.mxu0 %v463
        %536 = vmatmul.bf16.gmra.mxu0 %v481
        %v537 = vpop.f32.mrf.mxu0
        %v538 = vadd.f32 %v355, %v537
        %v539 = vpop.f32.mrf.mxu0
        %v540 = vadd.f32 %v355, %v539
        %541 = vmatmul.bf16.gmra.mxu0 %v484
        %v542 = vpop.f32.mrf.mxu0
        %v543 = vadd.f32 %v355, %v542
        %v544 = vpop.f32.mrf.mxu0
        %v545 = vadd.f32 %v355, %v544
        %546 = vmatmul.bf16.gmra.mxu0 %v487
        %v547 = vpop.f32.mrf.mxu0
        %v548 = vadd.f32 %v355, %v547
        %v549 = vpop.f32.mrf.mxu0
        %v550 = vadd.f32 %v355, %v549
        %551 = vmatmul.bf16.gmra.mxu0 %v490
        %v552 = vpop.f32.mrf.mxu0
        %v553 = vadd.f32 %v355, %v552
        %v554 = vpop.f32.mrf.mxu0
        %v555 = vadd.f32 %v355, %v554
        %556 = vmatmul.bf16.gmra.mxu0 %v493
        %v557 = vpop.f32.mrf.mxu0
        %v558 = vadd.f32 %v355, %v557
        %v559 = vpop.f32.mrf.mxu0
        %v560 = vadd.f32 %v355, %v559
        %561 = vmatmul.bf16.gmra.mxu0 %v496
        %v562 = vpop.f32.mrf.mxu0
        %v563 = vadd.f32 %v355, %v562
        %v564 = vpop.f32.mrf.mxu0
        %v565 = vadd.f32 %v355, %v564
        %566 = vmatmul.bf16.gmra.mxu0 %v499
        %v567 = vpop.f32.mrf.mxu0
        %v568 = vadd.f32 %v355, %v567
        %v569 = vpop.f32.mrf.mxu0
        %v570 = vadd.f32 %v355, %v569
        %571 = vmatmul.bf16.gmra.mxu0 %v502
        %v572 = vpop.f32.mrf.mxu0
        %v573 = vadd.f32 %v355, %v572
        %v574 = vpop.f32.mrf.mxu0
        %v575 = vadd.f32 %v355, %v574
        %576 = vmatmul.bf16.gmra.mxu0 %v505
        %v577 = vpop.f32.mrf.mxu0
        %v578 = vadd.f32 %v355, %v577
        %v579 = vpop.f32.mrf.mxu0
        %v580 = vadd.f32 %v355, %v579
        %581 = vmatmul.bf16.gmra.mxu0 %v508
        %v582 = vpop.f32.mrf.mxu0
        %v583 = vadd.f32 %v355, %v582
        %v584 = vpop.f32.mrf.mxu0
        %v585 = vadd.f32 %v355, %v584
        %586 = vmatmul.bf16.gmra.mxu0 %v511
        %v587 = vpop.f32.mrf.mxu0
        %v588 = vadd.f32 %v355, %v587
        %v589 = vpop.f32.mrf.mxu0
        %v590 = vadd.f32 %v355, %v589
        %591 = vmatmul.bf16.gmra.mxu0 %v514
        %v592 = vpop.f32.mrf.mxu0
        %v593 = vadd.f32 %v355, %v592
        %v594 = vpop.f32.mrf.mxu0
        %v595 = vadd.f32 %v355, %v594
        %596 = vmatmul.bf16.gmra.mxu0 %v517
        %v597 = vpop.f32.mrf.mxu0
        %v598 = vadd.f32 %v355, %v597
        %v599 = vpop.f32.mrf.mxu0
        %v600 = vadd.f32 %v355, %v599
        %601 = vmatmul.bf16.gmra.mxu0 %v520
        %v602 = vpop.f32.mrf.mxu0
        %v603 = vadd.f32 %v355, %v602
        %v604 = vpop.f32.mrf.mxu0
        %v605 = vadd.f32 %v355, %v604
        %606 = vmatmul.bf16.gmra.mxu0 %v523
        %v607 = vpop.f32.mrf.mxu0
        %v608 = vadd.f32 %v355, %v607
        %v609 = vpop.f32.mrf.mxu0
        %v610 = vadd.f32 %v355, %v609
        %611 = vmatmul.bf16.gmra.mxu0 %v526
        %v612 = vpop.f32.mrf.mxu0
        %v613 = vadd.f32 %v355, %v612
        %v614 = vpop.f32.mrf.mxu0
        %v615 = vadd.f32 %v355, %v614
        %616 = vdwg.mxu0
        %617 = vmatpush.bf16.msra.mxu0 0
        %618 = vmatpush.bf16.msra.mxu0 0
        %619 = vmatpush.bf16.msra.mxu0 0
        %620 = vmatpush.bf16.msra.mxu0 0
        %621 = vmatpush.bf16.msra.mxu0 %v470
        %622 = vmatpush.bf16.msra.mxu0 %v468
        %623 = vmatpush.bf16.msra.mxu0 %v466
        %624 = vmatpush.bf16.msra.mxu0 %v464
        %625 = vmatmul.bf16.gmra.mxu0 %v481
        %v626 = vpop.f32.mrf.mxu0
        %v627 = vadd.f32 %v356, %v626
        %v628 = vpop.f32.mrf.mxu0
        %v629 = vadd.f32 %v356, %v628
        %630 = vmatmul.bf16.gmra.mxu0 %v484
        %v631 = vpop.f32.mrf.mxu0
        %v632 = vadd.f32 %v356, %v631
        %v633 = vpop.f32.mrf.mxu0
        %v634 = vadd.f32 %v356, %v633
        %635 = vmatmul.bf16.gmra.mxu0 %v487
        %v636 = vpop.f32.mrf.mxu0
        %v637 = vadd.f32 %v356, %v636
        %v638 = vpop.f32.mrf.mxu0
        %v639 = vadd.f32 %v356, %v638
        %640 = vmatmul.bf16.gmra.mxu0 %v490
        %v641 = vpop.f32.mrf.mxu0
        %v642 = vadd.f32 %v356, %v641
        %v643 = vpop.f32.mrf.mxu0
        %v644 = vadd.f32 %v356, %v643
        %645 = vmatmul.bf16.gmra.mxu0 %v493
        %v646 = vpop.f32.mrf.mxu0
        %v647 = vadd.f32 %v356, %v646
        %v648 = vpop.f32.mrf.mxu0
        %v649 = vadd.f32 %v356, %v648
        %650 = vmatmul.bf16.gmra.mxu0 %v496
        %v651 = vpop.f32.mrf.mxu0
        %v652 = vadd.f32 %v356, %v651
        %v653 = vpop.f32.mrf.mxu0
        %v654 = vadd.f32 %v356, %v653
        %655 = vmatmul.bf16.gmra.mxu0 %v499
        %v656 = vpop.f32.mrf.mxu0
        %v657 = vadd.f32 %v356, %v656
        %v658 = vpop.f32.mrf.mxu0
        %v659 = vadd.f32 %v356, %v658
        %660 = vmatmul.bf16.gmra.mxu0 %v502
        %v661 = vpop.f32.mrf.mxu0
        %v662 = vadd.f32 %v356, %v661
        %v663 = vpop.f32.mrf.mxu0
        %v664 = vadd.f32 %v356, %v663
        %665 = vmatmul.bf16.gmra.mxu0 %v505
        %v666 = vpop.f32.mrf.mxu0
        %v667 = vadd.f32 %v356, %v666
        %v668 = vpop.f32.mrf.mxu0
        %v669 = vadd.f32 %v356, %v668
        %670 = vmatmul.bf16.gmra.mxu0 %v508
        %v671 = vpop.f32.mrf.mxu0
        %v672 = vadd.f32 %v356, %v671
        %v673 = vpop.f32.mrf.mxu0
        %v674 = vadd.f32 %v356, %v673
        %675 = vmatmul.bf16.gmra.mxu0 %v511
        %v676 = vpop.f32.mrf.mxu0
        %v677 = vadd.f32 %v356, %v676
        %v678 = vpop.f32.mrf.mxu0
        %v679 = vadd.f32 %v356, %v678
        %680 = vmatmul.bf16.gmra.mxu0 %v514
        %v681 = vpop.f32.mrf.mxu0
        %v682 = vadd.f32 %v356, %v681
        %v683 = vpop.f32.mrf.mxu0
        %v684 = vadd.f32 %v356, %v683
        %685 = vmatmul.bf16.gmra.mxu0 %v517
        %v686 = vpop.f32.mrf.mxu0
        %v687 = vadd.f32 %v356, %v686
        %v688 = vpop.f32.mrf.mxu0
        %v689 = vadd.f32 %v356, %v688
        %690 = vmatmul.bf16.gmra.mxu0 %v520
        %v691 = vpop.f32.mrf.mxu0
        %v692 = vadd.f32 %v356, %v691
        %v693 = vpop.f32.mrf.mxu0
        %v694 = vadd.f32 %v356, %v693
        %695 = vmatmul.bf16.gmra.mxu0 %v523
        %v696 = vpop.f32.mrf.mxu0
        %v697 = vadd.f32 %v356, %v696
        %v698 = vpop.f32.mrf.mxu0
        %v699 = vadd.f32 %v356, %v698
        %700 = vmatmul.bf16.gmra.mxu0 %v526
        %v701 = vpop.f32.mrf.mxu0
        %v702 = vadd.f32 %v356, %v701
        %v703 = vpop.f32.mrf.mxu0
        %v704 = vadd.f32 %v356, %v703
        %705 = vdwg.mxu0
        %v706 = vmax.f32 %v538, 0.0
        %v707 = vmax.f32 %v627, 0.0
        %v708 = vmax.f32 %v540, 0.0
        %v709 = vmax.f32 %v629, 0.0
        %v710 = vmax.f32 %v543, 0.0
        %v711 = vmax.f32 %v632, 0.0
        %v712 = vmax.f32 %v545, 0.0
        %v713 = vmax.f32 %v634, 0.0
        %v714 = vmax.f32 %v548, 0.0
        %v715 = vmax.f32 %v637, 0.0
        %v716 = vmax.f32 %v550, 0.0
        %v717 = vmax.f32 %v639, 0.0
        %v718 = vmax.f32 %v553, 0.0
        %v719 = vmax.f32 %v642, 0.0
        %v720 = vmax.f32 %v555, 0.0
        %v721 = vmax.f32 %v644, 0.0
        %v722 = vmax.f32 %v558, 0.0
        %v723 = vmax.f32 %v647, 0.0
        %v724 = vmax.f32 %v560, 0.0
        %v725 = vmax.f32 %v649, 0.0
        %v726 = vmax.f32 %v563, 0.0
        %v727 = vmax.f32 %v652, 0.0
        %v728 = vmax.f32 %v565, 0.0
        %v729 = vmax.f32 %v654, 0.0
        %v730 = vmax.f32 %v568, 0.0
        %v731 = vmax.f32 %v657, 0.0
        %v732 = vmax.f32 %v570, 0.0
        %v733 = vmax.f32 %v659, 0.0
        %v734 = vmax.f32 %v573, 0.0
        %v735 = vmax.f32 %v662, 0.0
        %v736 = vmax.f32 %v575, 0.0
        %v737 = vmax.f32 %v664, 0.0
        %v738 = vmax.f32 %v578, 0.0
        %v739 = vmax.f32 %v667, 0.0
        %v740 = vmax.f32 %v580, 0.0
        %v741 = vmax.f32 %v669, 0.0
        %v742 = vmax.f32 %v583, 0.0
        %v743 = vmax.f32 %v672, 0.0
        %v744 = vmax.f32 %v585, 0.0
        %v745 = vmax.f32 %v674, 0.0
        %v746 = vmax.f32 %v588, 0.0
        %v747 = vmax.f32 %v677, 0.0
        %v748 = vmax.f32 %v590, 0.0
        %v749 = vmax.f32 %v679, 0.0
        %v750 = vmax.f32 %v593, 0.0
        %v751 = vmax.f32 %v682, 0.0
        %v752 = vmax.f32 %v595, 0.0
        %v753 = vmax.f32 %v684, 0.0
        %v754 = vmax.f32 %v598, 0.0
        %v755 = vmax.f32 %v687, 0.0
        %v756 = vmax.f32 %v600, 0.0
        %v757 = vmax.f32 %v689, 0.0
        %v758 = vmax.f32 %v603, 0.0
        %v759 = vmax.f32 %v692, 0.0
        %v760 = vmax.f32 %v605, 0.0
        %v761 = vmax.f32 %v694, 0.0
        %v762 = vmax.f32 %v608, 0.0
        %v763 = vmax.f32 %v697, 0.0
        %v764 = vmax.f32 %v610, 0.0
        %v765 = vmax.f32 %v699, 0.0
        %v766 = vmax.f32 %v613, 0.0
        %v767 = vmax.f32 %v702, 0.0
        %v768 = vmax.f32 %v615, 0.0
        %v769 = vmax.f32 %v704, 0.0
        %v770 = vpack.c.bf16 %v708, %v706
        %v771 = vpack.c.bf16 %v709, %v707
        %v772 = vpack.c.bf16 %v712, %v710
        %v773 = vpack.c.bf16 %v713, %v711
        %v774 = vpack.c.bf16 %v716, %v714
        %v775 = vpack.c.bf16 %v717, %v715
        %v776 = vpack.c.bf16 %v720, %v718
        %v777 = vpack.c.bf16 %v721, %v719
        %v778 = vpack.c.bf16 %v724, %v722
        %v779 = vpack.c.bf16 %v725, %v723
        %v780 = vpack.c.bf16 %v728, %v726
        %v781 = vpack.c.bf16 %v729, %v727
        %v782 = vpack.c.bf16 %v732, %v730
        %v783 = vpack.c.bf16 %v733, %v731
        %v784 = vpack.c.bf16 %v736, %v734
        %v785 = vpack.c.bf16 %v737, %v735
        %v786 = vpack.c.bf16 %v740, %v738
        %v787 = vpack.c.bf16 %v741, %v739
        %v788 = vpack.c.bf16 %v744, %v742
        %v789 = vpack.c.bf16 %v745, %v743
        %v790 = vpack.c.bf16 %v748, %v746
        %v791 = vpack.c.bf16 %v749, %v747
        %v792 = vpack.c.bf16 %v752, %v750
        %v793 = vpack.c.bf16 %v753, %v751
        %v794 = vpack.c.bf16 %v756, %v754
        %v795 = vpack.c.bf16 %v757, %v755
        %v796 = vpack.c.bf16 %v760, %v758
        %v797 = vpack.c.bf16 %v761, %v759
        %v798 = vpack.c.bf16 %v764, %v762
        %v799 = vpack.c.bf16 %v765, %v763
        %v800 = vpack.c.bf16 %v768, %v766
        %v801 = vpack.c.bf16 %v769, %v767
        %v802 = vld [vmem:[%s3] sm:$0xff]
        %v803 = vld [vmem:[%s3 + $0x8] sm:$0xff]
        %v804 = vld [vmem:[%s3 + $0x10] sm:$0xff]
        %v805 = vld [vmem:[%s3 + $0x18] sm:$0xff]
        %v806 = vld [vmem:[%s3 + $0x20] sm:$0xff]
        %v807 = vld [vmem:[%s3 + $0x28] sm:$0xff]
        %v808 = vld [vmem:[%s3 + $0x30] sm:$0xff]
        %v809 = vld [vmem:[%s3 + $0x38] sm:$0xff]
        %v810 = vld [vmem:[%s3 + $0x40] sm:$0xff]
        %v811 = vld [vmem:[%s3 + $0x48] sm:$0xff]
        %v812 = vld [vmem:[%s3 + $0x50] sm:$0xff]
        %v813 = vld [vmem:[%s3 + $0x58] sm:$0xff]
        %v814 = vld [vmem:[%s3 + $0x60] sm:$0xff]
        %v815 = vld [vmem:[%s3 + $0x68] sm:$0xff]
        %v816 = vld [vmem:[%s3 + $0x70] sm:$0xff]
        %v817 = vld [vmem:[%s3 + $0x78] sm:$0xff]
        %v818 = vld [vmem:[%s3 + $0x80] sm:$0xff]
        %v819 = vld [vmem:[%s3 + $0x88] sm:$0xff]
        %v820 = vld [vmem:[%s3 + $0x90] sm:$0xff]
        %v821 = vld [vmem:[%s3 + $0x98] sm:$0xff]
        %v822 = vld [vmem:[%s3 + $0xa0] sm:$0xff]
        %v823 = vld [vmem:[%s3 + $0xa8] sm:$0xff]
        %v824 = vld [vmem:[%s3 + $0xb0] sm:$0xff]
        %v825 = vld [vmem:[%s3 + $0xb8] sm:$0xff]
        %v826 = vld [vmem:[%s3 + $0xc0] sm:$0xff]
        %v827 = vld [vmem:[%s3 + $0xc8] sm:$0xff]
        %v828 = vld [vmem:[%s3 + $0xd0] sm:$0xff]
        %v829 = vld [vmem:[%s3 + $0xd8] sm:$0xff]
        %v830 = vld [vmem:[%s3 + $0xe0] sm:$0xff]
        %v831 = vld [vmem:[%s3 + $0xe8] sm:$0xff]
        %v832 = vld [vmem:[%s3 + $0xf0] sm:$0xff]
        %v833 = vld [vmem:[%s3 + $0xf8] sm:$0xff]
        %v834 = vld [vmem:[#allocation5] sm:$0x3]
        %v836 = vperm.slane %v834, 0
        %v837 = vperm.slane %v834, 1
        %v872 = vunpack.c.l.b16 %v802
        %v873 = vunpack.c.h.b16 %v802
        %v874 = vunpack.c.l.b16 %v803
        %v875 = vunpack.c.h.b16 %v803
        %v876 = vunpack.c.l.b16 %v804
        %v877 = vunpack.c.h.b16 %v804
        %v878 = vunpack.c.l.b16 %v805
        %v879 = vunpack.c.h.b16 %v805
        %v880 = vunpack.c.l.b16 %v806
        %v881 = vunpack.c.h.b16 %v806
        %v882 = vunpack.c.l.b16 %v807
        %v883 = vunpack.c.h.b16 %v807
        %v884 = vunpack.c.l.b16 %v808
        %v885 = vunpack.c.h.b16 %v808
        %v886 = vunpack.c.l.b16 %v809
        %v887 = vunpack.c.h.b16 %v809
        %v888 = vunpack.c.l.b16 %v810
        %v889 = vunpack.c.h.b16 %v810
        %v890 = vunpack.c.l.b16 %v811
        %v891 = vunpack.c.h.b16 %v811
        %v892 = vunpack.c.l.b16 %v812
        %v893 = vunpack.c.h.b16 %v812
        %v894 = vunpack.c.l.b16 %v813
        %v895 = vunpack.c.h.b16 %v813
        %v896 = vunpack.c.l.b16 %v814
        %v897 = vunpack.c.h.b16 %v814
        %v898 = vunpack.c.l.b16 %v815
        %v899 = vunpack.c.h.b16 %v815
        %v900 = vunpack.c.l.b16 %v816
        %v901 = vunpack.c.h.b16 %v816
        %v902 = vunpack.c.l.b16 %v817
        %v903 = vunpack.c.h.b16 %v817
        %v904 = vunpack.c.l.b16 %v818
        %v905 = vunpack.c.h.b16 %v818
        %v906 = vunpack.c.l.b16 %v819
        %v907 = vunpack.c.h.b16 %v819
        %v908 = vunpack.c.l.b16 %v820
        %v909 = vunpack.c.h.b16 %v820
        %v910 = vunpack.c.l.b16 %v821
        %v911 = vunpack.c.h.b16 %v821
        %v912 = vunpack.c.l.b16 %v822
        %v913 = vunpack.c.h.b16 %v822
        %v914 = vunpack.c.l.b16 %v823
        %v915 = vunpack.c.h.b16 %v823
        %v916 = vunpack.c.l.b16 %v824
        %v917 = vunpack.c.h.b16 %v824
        %v918 = vunpack.c.l.b16 %v825
        %v919 = vunpack.c.h.b16 %v825
        %v920 = vunpack.c.l.b16 %v826
        %v921 = vunpack.c.h.b16 %v826
        %v922 = vunpack.c.l.b16 %v827
        %v923 = vunpack.c.h.b16 %v827
        %v924 = vunpack.c.l.b16 %v828
        %v925 = vunpack.c.h.b16 %v828
        %v926 = vunpack.c.l.b16 %v829
        %v927 = vunpack.c.h.b16 %v829
        %v928 = vunpack.c.l.b16 %v830
        %v929 = vunpack.c.h.b16 %v830
        %v930 = vunpack.c.l.b16 %v831
        %v931 = vunpack.c.h.b16 %v831
        %v932 = vunpack.c.l.b16 %v832
        %v933 = vunpack.c.h.b16 %v832
        %v934 = vunpack.c.l.b16 %v833
        %v935 = vunpack.c.h.b16 %v833
        %v936 = vpack.c.b16 %v874, %v872
        %v937 = vpack.c.b16 %v875, %v873
        %v938 = vpack.c.b16 %v878, %v876
        %v939 = vpack.c.b16 %v879, %v877
        %v940 = vpack.c.b16 %v882, %v880
        %v941 = vpack.c.b16 %v883, %v881
        %v942 = vpack.c.b16 %v886, %v884
        %v943 = vpack.c.b16 %v887, %v885
        %v944 = vpack.c.b16 %v890, %v888
        %v945 = vpack.c.b16 %v891, %v889
        %v946 = vpack.c.b16 %v894, %v892
        %v947 = vpack.c.b16 %v895, %v893
        %v948 = vpack.c.b16 %v898, %v896
        %v949 = vpack.c.b16 %v899, %v897
        %v950 = vpack.c.b16 %v902, %v900
        %v951 = vpack.c.b16 %v903, %v901
        %v952 = vpack.c.b16 %v906, %v904
        %v953 = vpack.c.b16 %v907, %v905
        %v954 = vpack.c.b16 %v910, %v908
        %v955 = vpack.c.b16 %v911, %v909
        %v956 = vpack.c.b16 %v914, %v912
        %v957 = vpack.c.b16 %v915, %v913
        %v958 = vpack.c.b16 %v918, %v916
        %v959 = vpack.c.b16 %v919, %v917
        %v960 = vpack.c.b16 %v922, %v920
        %v961 = vpack.c.b16 %v923, %v921
        %v962 = vpack.c.b16 %v926, %v924
        %v963 = vpack.c.b16 %v927, %v925
        %v964 = vpack.c.b16 %v930, %v928
        %v965 = vpack.c.b16 %v931, %v929
        %v966 = vpack.c.b16 %v934, %v932
        %v967 = vpack.c.b16 %v935, %v933
        %1000 = vmatpush.bf16.msra.mxu0 %v950
        %1001 = vmatpush.bf16.msra.mxu0 %v948
        %1002 = vmatpush.bf16.msra.mxu0 %v946
        %1003 = vmatpush.bf16.msra.mxu0 %v944
        %1004 = vmatpush.bf16.msra.mxu0 %v942
        %1005 = vmatpush.bf16.msra.mxu0 %v940
        %1006 = vmatpush.bf16.msra.mxu0 %v938
        %1007 = vmatpush.bf16.msra.mxu0 %v936
        %1008 = vmatmul.bf16.gmra.mxu0 %v770
        %v1009 = vpop.f32.mrf.mxu0
        %v1010 = vadd.f32 %v836, %v1009
        %v1011 = vpop.f32.mrf.mxu0
        %v1012 = vadd.f32 %v836, %v1011
        %1013 = vmatmul.bf16.gmra.mxu0 %v772
        %v1014 = vpop.f32.mrf.mxu0
        %v1015 = vadd.f32 %v836, %v1014
        %v1016 = vpop.f32.mrf.mxu0
        %v1017 = vadd.f32 %v836, %v1016
        %1018 = vmatmul.bf16.gmra.mxu0 %v774
        %v1019 = vpop.f32.mrf.mxu0
        %v1020 = vadd.f32 %v836, %v1019
        %v1021 = vpop.f32.mrf.mxu0
        %v1022 = vadd.f32 %v836, %v1021
        %1023 = vmatmul.bf16.gmra.mxu0 %v776
        %v1024 = vpop.f32.mrf.mxu0
        %v1025 = vadd.f32 %v836, %v1024
        %v1026 = vpop.f32.mrf.mxu0
        %v1027 = vadd.f32 %v836, %v1026
        %1028 = vmatmul.bf16.gmra.mxu0 %v778
        %v1029 = vpop.f32.mrf.mxu0
        %v1030 = vadd.f32 %v836, %v1029
        %v1031 = vpop.f32.mrf.mxu0
        %v1032 = vadd.f32 %v836, %v1031
        %1033 = vmatmul.bf16.gmra.mxu0 %v780
        %v1034 = vpop.f32.mrf.mxu0
        %v1035 = vadd.f32 %v836, %v1034
        %v1036 = vpop.f32.mrf.mxu0
        %v1037 = vadd.f32 %v836, %v1036
        %1038 = vmatmul.bf16.gmra.mxu0 %v782
        %v1039 = vpop.f32.mrf.mxu0
        %v1040 = vadd.f32 %v836, %v1039
        %v1041 = vpop.f32.mrf.mxu0
        %v1042 = vadd.f32 %v836, %v1041
        %1043 = vmatmul.bf16.gmra.mxu0 %v784
        %v1044 = vpop.f32.mrf.mxu0
        %v1045 = vadd.f32 %v836, %v1044
        %v1046 = vpop.f32.mrf.mxu0
        %v1047 = vadd.f32 %v836, %v1046
        %1048 = vmatmul.bf16.gmra.mxu0 %v786
        %v1049 = vpop.f32.mrf.mxu0
        %v1050 = vadd.f32 %v836, %v1049
        %v1051 = vpop.f32.mrf.mxu0
        %v1052 = vadd.f32 %v836, %v1051
        %1053 = vmatmul.bf16.gmra.mxu0 %v788
        %v1054 = vpop.f32.mrf.mxu0
        %v1055 = vadd.f32 %v836, %v1054
        %v1056 = vpop.f32.mrf.mxu0
        %v1057 = vadd.f32 %v836, %v1056
        %1058 = vmatmul.bf16.gmra.mxu0 %v790
        %v1059 = vpop.f32.mrf.mxu0
        %v1060 = vadd.f32 %v836, %v1059
        %v1061 = vpop.f32.mrf.mxu0
        %v1062 = vadd.f32 %v836, %v1061
        %1063 = vmatmul.bf16.gmra.mxu0 %v792
        %v1064 = vpop.f32.mrf.mxu0
        %v1065 = vadd.f32 %v836, %v1064
        %v1066 = vpop.f32.mrf.mxu0
        %v1067 = vadd.f32 %v836, %v1066
        %1068 = vmatmul.bf16.gmra.mxu0 %v794
        %v1069 = vpop.f32.mrf.mxu0
        %v1070 = vadd.f32 %v836, %v1069
        %v1071 = vpop.f32.mrf.mxu0
        %v1072 = vadd.f32 %v836, %v1071
        %1073 = vmatmul.bf16.gmra.mxu0 %v796
        %v1074 = vpop.f32.mrf.mxu0
        %v1075 = vadd.f32 %v836, %v1074
        %v1076 = vpop.f32.mrf.mxu0
        %v1077 = vadd.f32 %v836, %v1076
        %1078 = vmatmul.bf16.gmra.mxu0 %v798
        %v1079 = vpop.f32.mrf.mxu0
        %v1080 = vadd.f32 %v836, %v1079
        %v1081 = vpop.f32.mrf.mxu0
        %v1082 = vadd.f32 %v836, %v1081
        %1083 = vmatmul.bf16.gmra.mxu0 %v800
        %v1084 = vpop.f32.mrf.mxu0
        %v1085 = vadd.f32 %v836, %v1084
        %v1086 = vpop.f32.mrf.mxu0
        %v1087 = vadd.f32 %v836, %v1086
        %1088 = vdwg.mxu0
        %1089 = vmatpush.bf16.msra.mxu0 %v966
        %1090 = vmatpush.bf16.msra.mxu0 %v964
        %1091 = vmatpush.bf16.msra.mxu0 %v962
        %1092 = vmatpush.bf16.msra.mxu0 %v960
        %1093 = vmatpush.bf16.msra.mxu0 %v958
        %1094 = vmatpush.bf16.msra.mxu0 %v956
        %1095 = vmatpush.bf16.msra.mxu0 %v954
        %1096 = vmatpush.bf16.msra.mxu0 %v952
        %1097 = vmatmul.bf16.gmra.mxu0 %v771
        %v1098 = vpop.f32.mrf.mxu0
        %v1099 = vadd.f32 %v1010, %v1098
        %v1100 = vpop.f32.mrf.mxu0
        %v1101 = vadd.f32 %v1012, %v1100
        %1102 = vmatmul.bf16.gmra.mxu0 %v773
        %v1103 = vpop.f32.mrf.mxu0
        %v1104 = vadd.f32 %v1015, %v1103
        %v1105 = vpop.f32.mrf.mxu0
        %v1106 = vadd.f32 %v1017, %v1105
        %1107 = vmatmul.bf16.gmra.mxu0 %v775
        %v1108 = vpop.f32.mrf.mxu0
        %v1109 = vadd.f32 %v1020, %v1108
        %v1110 = vpop.f32.mrf.mxu0
        %v1111 = vadd.f32 %v1022, %v1110
        %1112 = vmatmul.bf16.gmra.mxu0 %v777
        %v1113 = vpop.f32.mrf.mxu0
        %v1114 = vadd.f32 %v1025, %v1113
        %v1115 = vpop.f32.mrf.mxu0
        %v1116 = vadd.f32 %v1027, %v1115
        %1117 = vmatmul.bf16.gmra.mxu0 %v779
        %v1118 = vpop.f32.mrf.mxu0
        %v1119 = vadd.f32 %v1030, %v1118
        %v1120 = vpop.f32.mrf.mxu0
        %v1121 = vadd.f32 %v1032, %v1120
        %1122 = vmatmul.bf16.gmra.mxu0 %v781
        %v1123 = vpop.f32.mrf.mxu0
        %v1124 = vadd.f32 %v1035, %v1123
        %v1125 = vpop.f32.mrf.mxu0
        %v1126 = vadd.f32 %v1037, %v1125
        %1127 = vmatmul.bf16.gmra.mxu0 %v783
        %v1128 = vpop.f32.mrf.mxu0
        %v1129 = vadd.f32 %v1040, %v1128
        %v1130 = vpop.f32.mrf.mxu0
        %v1131 = vadd.f32 %v1042, %v1130
        %1132 = vmatmul.bf16.gmra.mxu0 %v785
        %v1133 = vpop.f32.mrf.mxu0
        %v1134 = vadd.f32 %v1045, %v1133
        %v1135 = vpop.f32.mrf.mxu0
        %v1136 = vadd.f32 %v1047, %v1135
        %1137 = vmatmul.bf16.gmra.mxu0 %v787
        %v1138 = vpop.f32.mrf.mxu0
        %v1139 = vadd.f32 %v1050, %v1138
        %v1140 = vpop.f32.mrf.mxu0
        %v1141 = vadd.f32 %v1052, %v1140
        %1142 = vmatmul.bf16.gmra.mxu0 %v789
        %v1143 = vpop.f32.mrf.mxu0
        %v1144 = vadd.f32 %v1055, %v1143
        %v1145 = vpop.f32.mrf.mxu0
        %v1146 = vadd.f32 %v1057, %v1145
        %1147 = vmatmul.bf16.gmra.mxu0 %v791
        %v1148 = vpop.f32.mrf.mxu0
        %v1149 = vadd.f32 %v1060, %v1148
        %v1150 = vpop.f32.mrf.mxu0
        %v1151 = vadd.f32 %v1062, %v1150
        %1152 = vmatmul.bf16.gmra.mxu0 %v793
        %v1153 = vpop.f32.mrf.mxu0
        %v1154 = vadd.f32 %v1065, %v1153
        %v1155 = vpop.f32.mrf.mxu0
        %v1156 = vadd.f32 %v1067, %v1155
        %1157 = vmatmul.bf16.gmra.mxu0 %v795
        %v1158 = vpop.f32.mrf.mxu0
        %v1159 = vadd.f32 %v1070, %v1158
        %v1160 = vpop.f32.mrf.mxu0
        %v1161 = vadd.f32 %v1072, %v1160
        %1162 = vmatmul.bf16.gmra.mxu0 %v797
        %v1163 = vpop.f32.mrf.mxu0
        %v1164 = vadd.f32 %v1075, %v1163
        %v1165 = vpop.f32.mrf.mxu0
        %v1166 = vadd.f32 %v1077, %v1165
        %1167 = vmatmul.bf16.gmra.mxu0 %v799
        %v1168 = vpop.f32.mrf.mxu0
        %v1169 = vadd.f32 %v1080, %v1168
        %v1170 = vpop.f32.mrf.mxu0
        %v1171 = vadd.f32 %v1082, %v1170
        %1172 = vmatmul.bf16.gmra.mxu0 %v801
        %v1173 = vpop.f32.mrf.mxu0
        %v1174 = vadd.f32 %v1085, %v1173
        %v1175 = vpop.f32.mrf.mxu0
        %v1176 = vadd.f32 %v1087, %v1175
        %1177 = vdwg.mxu0
        %1178 = vmatpush.bf16.msra.mxu0 %v951
        %1179 = vmatpush.bf16.msra.mxu0 %v949
        %1180 = vmatpush.bf16.msra.mxu0 %v947
        %1181 = vmatpush.bf16.msra.mxu0 %v945
        %1182 = vmatpush.bf16.msra.mxu0 %v943
        %1183 = vmatpush.bf16.msra.mxu0 %v941
        %1184 = vmatpush.bf16.msra.mxu0 %v939
        %1185 = vmatpush.bf16.msra.mxu0 %v937
        %1186 = vmatmul.bf16.gmra.mxu0 %v770
        %v1187 = vpop.f32.mrf.mxu0
        %v1188 = vadd.f32 %v837, %v1187
        %v1189 = vpop.f32.mrf.mxu0
        %v1190 = vadd.f32 %v837, %v1189
        %1191 = vmatmul.bf16.gmra.mxu0 %v772
        %v1192 = vpop.f32.mrf.mxu0
        %v1193 = vadd.f32 %v837, %v1192
        %v1194 = vpop.f32.mrf.mxu0
        %v1195 = vadd.f32 %v837, %v1194
        %1196 = vmatmul.bf16.gmra.mxu0 %v774
        %v1197 = vpop.f32.mrf.mxu0
        %v1198 = vadd.f32 %v837, %v1197
        %v1199 = vpop.f32.mrf.mxu0
        %v1200 = vadd.f32 %v837, %v1199
        %1201 = vmatmul.bf16.gmra.mxu0 %v776
        %v1202 = vpop.f32.mrf.mxu0
        %v1203 = vadd.f32 %v837, %v1202
        %v1204 = vpop.f32.mrf.mxu0
        %v1205 = vadd.f32 %v837, %v1204
        %1206 = vmatmul.bf16.gmra.mxu0 %v778
        %v1207 = vpop.f32.mrf.mxu0
        %v1208 = vadd.f32 %v837, %v1207
        %v1209 = vpop.f32.mrf.mxu0
        %v1210 = vadd.f32 %v837, %v1209
        %1211 = vmatmul.bf16.gmra.mxu0 %v780
        %v1212 = vpop.f32.mrf.mxu0
        %v1213 = vadd.f32 %v837, %v1212
        %v1214 = vpop.f32.mrf.mxu0
        %v1215 = vadd.f32 %v837, %v1214
        %1216 = vmatmul.bf16.gmra.mxu0 %v782
        %v1217 = vpop.f32.mrf.mxu0
        %v1218 = vadd.f32 %v837, %v1217
        %v1219 = vpop.f32.mrf.mxu0
        %v1220 = vadd.f32 %v837, %v1219
        %1221 = vmatmul.bf16.gmra.mxu0 %v784
        %v1222 = vpop.f32.mrf.mxu0
        %v1223 = vadd.f32 %v837, %v1222
        %v1224 = vpop.f32.mrf.mxu0
        %v1225 = vadd.f32 %v837, %v1224
        %1226 = vmatmul.bf16.gmra.mxu0 %v786
        %v1227 = vpop.f32.mrf.mxu0
        %v1228 = vadd.f32 %v837, %v1227
        %v1229 = vpop.f32.mrf.mxu0
        %v1230 = vadd.f32 %v837, %v1229
        %1231 = vmatmul.bf16.gmra.mxu0 %v788
        %v1232 = vpop.f32.mrf.mxu0
        %v1233 = vadd.f32 %v837, %v1232
        %v1234 = vpop.f32.mrf.mxu0
        %v1235 = vadd.f32 %v837, %v1234
        %1236 = vmatmul.bf16.gmra.mxu0 %v790
        %v1237 = vpop.f32.mrf.mxu0
        %v1238 = vadd.f32 %v837, %v1237
        %v1239 = vpop.f32.mrf.mxu0
        %v1240 = vadd.f32 %v837, %v1239
        %1241 = vmatmul.bf16.gmra.mxu0 %v792
        %v1242 = vpop.f32.mrf.mxu0
        %v1243 = vadd.f32 %v837, %v1242
        %v1244 = vpop.f32.mrf.mxu0
        %v1245 = vadd.f32 %v837, %v1244
        %1246 = vmatmul.bf16.gmra.mxu0 %v794
        %v1247 = vpop.f32.mrf.mxu0
        %v1248 = vadd.f32 %v837, %v1247
        %v1249 = vpop.f32.mrf.mxu0
        %v1250 = vadd.f32 %v837, %v1249
        %1251 = vmatmul.bf16.gmra.mxu0 %v796
        %v1252 = vpop.f32.mrf.mxu0
        %v1253 = vadd.f32 %v837, %v1252
        %v1254 = vpop.f32.mrf.mxu0
        %v1255 = vadd.f32 %v837, %v1254
        %1256 = vmatmul.bf16.gmra.mxu0 %v798
        %v1257 = vpop.f32.mrf.mxu0
        %v1258 = vadd.f32 %v837, %v1257
        %v1259 = vpop.f32.mrf.mxu0
        %v1260 = vadd.f32 %v837, %v1259
        %1261 = vmatmul.bf16.gmra.mxu0 %v800
        %v1262 = vpop.f32.mrf.mxu0
        %v1263 = vadd.f32 %v837, %v1262
        %v1264 = vpop.f32.mrf.mxu0
        %v1265 = vadd.f32 %v837, %v1264
        %1266 = vdwg.mxu0
        %1267 = vmatpush.bf16.msra.mxu0 %v967
        %1268 = vmatpush.bf16.msra.mxu0 %v965
        %1269 = vmatpush.bf16.msra.mxu0 %v963
        %1270 = vmatpush.bf16.msra.mxu0 %v961
        %1271 = vmatpush.bf16.msra.mxu0 %v959
        %1272 = vmatpush.bf16.msra.mxu0 %v957
        %1273 = vmatpush.bf16.msra.mxu0 %v955
        %1274 = vmatpush.bf16.msra.mxu0 %v953
        %1275 = vmatmul.bf16.gmra.mxu0 %v771
        %v1276 = vpop.f32.mrf.mxu0
        %v1277 = vadd.f32 %v1188, %v1276
        %v1278 = vpop.f32.mrf.mxu0
        %v1279 = vadd.f32 %v1190, %v1278
        %1280 = vmatmul.bf16.gmra.mxu0 %v773
        %v1281 = vpop.f32.mrf.mxu0
        %v1282 = vadd.f32 %v1193, %v1281
        %v1283 = vpop.f32.mrf.mxu0
        %v1284 = vadd.f32 %v1195, %v1283
        %1285 = vmatmul.bf16.gmra.mxu0 %v775
        %v1286 = vpop.f32.mrf.mxu0
        %v1287 = vadd.f32 %v1198, %v1286
        %v1288 = vpop.f32.mrf.mxu0
        %v1289 = vadd.f32 %v1200, %v1288
        %1290 = vmatmul.bf16.gmra.mxu0 %v777
        %v1291 = vpop.f32.mrf.mxu0
        %v1292 = vadd.f32 %v1203, %v1291
        %v1293 = vpop.f32.mrf.mxu0
        %v1294 = vadd.f32 %v1205, %v1293
        %1295 = vmatmul.bf16.gmra.mxu0 %v779
        %v1296 = vpop.f32.mrf.mxu0
        %v1297 = vadd.f32 %v1208, %v1296
        %v1298 = vpop.f32.mrf.mxu0
        %v1299 = vadd.f32 %v1210, %v1298
        %1300 = vmatmul.bf16.gmra.mxu0 %v781
        %v1301 = vpop.f32.mrf.mxu0
        %v1302 = vadd.f32 %v1213, %v1301
        %v1303 = vpop.f32.mrf.mxu0
        %v1304 = vadd.f32 %v1215, %v1303
        %1305 = vmatmul.bf16.gmra.mxu0 %v783
        %v1306 = vpop.f32.mrf.mxu0
        %v1307 = vadd.f32 %v1218, %v1306
        %v1308 = vpop.f32.mrf.mxu0
        %v1309 = vadd.f32 %v1220, %v1308
        %1310 = vmatmul.bf16.gmra.mxu0 %v785
        %v1311 = vpop.f32.mrf.mxu0
        %v1312 = vadd.f32 %v1223, %v1311
        %v1313 = vpop.f32.mrf.mxu0
        %v1314 = vadd.f32 %v1225, %v1313
        %1315 = vmatmul.bf16.gmra.mxu0 %v787
        %v1316 = vpop.f32.mrf.mxu0
        %v1317 = vadd.f32 %v1228, %v1316
        %v1318 = vpop.f32.mrf.mxu0
        %v1319 = vadd.f32 %v1230, %v1318
        %1320 = vmatmul.bf16.gmra.mxu0 %v789
        %v1321 = vpop.f32.mrf.mxu0
        %v1322 = vadd.f32 %v1233, %v1321
        %v1323 = vpop.f32.mrf.mxu0
        %v1324 = vadd.f32 %v1235, %v1323
        %1325 = vmatmul.bf16.gmra.mxu0 %v791
        %v1326 = vpop.f32.mrf.mxu0
        %v1327 = vadd.f32 %v1238, %v1326
        %v1328 = vpop.f32.mrf.mxu0
        %v1329 = vadd.f32 %v1240, %v1328
        %1330 = vmatmul.bf16.gmra.mxu0 %v793
        %v1331 = vpop.f32.mrf.mxu0
        %v1332 = vadd.f32 %v1243, %v1331
        %v1333 = vpop.f32.mrf.mxu0
        %v1334 = vadd.f32 %v1245, %v1333
        %1335 = vmatmul.bf16.gmra.mxu0 %v795
        %v1336 = vpop.f32.mrf.mxu0
        %v1337 = vadd.f32 %v1248, %v1336
        %v1338 = vpop.f32.mrf.mxu0
        %v1339 = vadd.f32 %v1250, %v1338
        %1340 = vmatmul.bf16.gmra.mxu0 %v797
        %v1341 = vpop.f32.mrf.mxu0
        %v1342 = vadd.f32 %v1253, %v1341
        %v1343 = vpop.f32.mrf.mxu0
        %v1344 = vadd.f32 %v1255, %v1343
        %1345 = vmatmul.bf16.gmra.mxu0 %v799
        %v1346 = vpop.f32.mrf.mxu0
        %v1347 = vadd.f32 %v1258, %v1346
        %v1348 = vpop.f32.mrf.mxu0
        %v1349 = vadd.f32 %v1260, %v1348
        %1350 = vmatmul.bf16.gmra.mxu0 %v801
        %v1351 = vpop.f32.mrf.mxu0
        %v1352 = vadd.f32 %v1263, %v1351
        %v1353 = vpop.f32.mrf.mxu0
        %v1354 = vadd.f32 %v1265, %v1353
        %1355 = vdwg.mxu0
        %v1356 = vmax.f32 %v1099, 0.0
        %v1357 = vmax.f32 %v1277, 0.0
        %v1358 = vmax.f32 %v1101, 0.0
        %v1359 = vmax.f32 %v1279, 0.0
        %v1360 = vmax.f32 %v1104, 0.0
        %v1361 = vmax.f32 %v1282, 0.0
        %v1362 = vmax.f32 %v1106, 0.0
        %v1363 = vmax.f32 %v1284, 0.0
        %v1364 = vmax.f32 %v1109, 0.0
        %v1365 = vmax.f32 %v1287, 0.0
        %v1366 = vmax.f32 %v1111, 0.0
        %v1367 = vmax.f32 %v1289, 0.0
        %v1368 = vmax.f32 %v1114, 0.0
        %v1369 = vmax.f32 %v1292, 0.0
        %v1370 = vmax.f32 %v1116, 0.0
        %v1371 = vmax.f32 %v1294, 0.0
        %v1372 = vmax.f32 %v1119, 0.0
        %v1373 = vmax.f32 %v1297, 0.0
        %v1374 = vmax.f32 %v1121, 0.0
        %v1375 = vmax.f32 %v1299, 0.0
        %v1376 = vmax.f32 %v1124, 0.0
        %v1377 = vmax.f32 %v1302, 0.0
        %v1378 = vmax.f32 %v1126, 0.0
        %v1379 = vmax.f32 %v1304, 0.0
        %v1380 = vmax.f32 %v1129, 0.0
        %v1381 = vmax.f32 %v1307, 0.0
        %v1382 = vmax.f32 %v1131, 0.0
        %v1383 = vmax.f32 %v1309, 0.0
        %v1384 = vmax.f32 %v1134, 0.0
        %v1385 = vmax.f32 %v1312, 0.0
        %v1386 = vmax.f32 %v1136, 0.0
        %v1387 = vmax.f32 %v1314, 0.0
        %v1388 = vmax.f32 %v1139, 0.0
        %v1389 = vmax.f32 %v1317, 0.0
        %v1390 = vmax.f32 %v1141, 0.0
        %v1391 = vmax.f32 %v1319, 0.0
        %v1392 = vmax.f32 %v1144, 0.0
        %v1393 = vmax.f32 %v1322, 0.0
        %v1394 = vmax.f32 %v1146, 0.0
        %v1395 = vmax.f32 %v1324, 0.0
        %v1396 = vmax.f32 %v1149, 0.0
        %v1397 = vmax.f32 %v1327, 0.0
        %v1398 = vmax.f32 %v1151, 0.0
        %v1399 = vmax.f32 %v1329, 0.0
        %v1400 = vmax.f32 %v1154, 0.0
        %v1401 = vmax.f32 %v1332, 0.0
        %v1402 = vmax.f32 %v1156, 0.0
        %v1403 = vmax.f32 %v1334, 0.0
        %v1404 = vmax.f32 %v1159, 0.0
        %v1405 = vmax.f32 %v1337, 0.0
        %v1406 = vmax.f32 %v1161, 0.0
        %v1407 = vmax.f32 %v1339, 0.0
        %v1408 = vmax.f32 %v1164, 0.0
        %v1409 = vmax.f32 %v1342, 0.0
        %v1410 = vmax.f32 %v1166, 0.0
        %v1411 = vmax.f32 %v1344, 0.0
        %v1412 = vmax.f32 %v1169, 0.0
        %v1413 = vmax.f32 %v1347, 0.0
        %v1414 = vmax.f32 %v1171, 0.0
        %v1415 = vmax.f32 %v1349, 0.0
        %v1416 = vmax.f32 %v1174, 0.0
        %v1417 = vmax.f32 %v1352, 0.0
        %v1418 = vmax.f32 %v1176, 0.0
        %v1419 = vmax.f32 %v1354, 0.0
        %v1420 = vpack.c.bf16 %v1358, %v1356
        %v1421 = vpack.c.bf16 %v1359, %v1357
        %v1422 = vpack.c.bf16 %v1362, %v1360
        %v1423 = vpack.c.bf16 %v1363, %v1361
        %v1424 = vpack.c.bf16 %v1366, %v1364
        %v1425 = vpack.c.bf16 %v1367, %v1365
        %v1426 = vpack.c.bf16 %v1370, %v1368
        %v1427 = vpack.c.bf16 %v1371, %v1369
        %v1428 = vpack.c.bf16 %v1374, %v1372
        %v1429 = vpack.c.bf16 %v1375, %v1373
        %v1430 = vpack.c.bf16 %v1378, %v1376
        %v1431 = vpack.c.bf16 %v1379, %v1377
        %v1432 = vpack.c.bf16 %v1382, %v1380
        %v1433 = vpack.c.bf16 %v1383, %v1381
        %v1434 = vpack.c.bf16 %v1386, %v1384
        %v1435 = vpack.c.bf16 %v1387, %v1385
        %v1436 = vpack.c.bf16 %v1390, %v1388
        %v1437 = vpack.c.bf16 %v1391, %v1389
        %v1438 = vpack.c.bf16 %v1394, %v1392
        %v1439 = vpack.c.bf16 %v1395, %v1393
        %v1440 = vpack.c.bf16 %v1398, %v1396
        %v1441 = vpack.c.bf16 %v1399, %v1397
        %v1442 = vpack.c.bf16 %v1402, %v1400
        %v1443 = vpack.c.bf16 %v1403, %v1401
        %v1444 = vpack.c.bf16 %v1406, %v1404
        %v1445 = vpack.c.bf16 %v1407, %v1405
        %v1446 = vpack.c.bf16 %v1410, %v1408
        %v1447 = vpack.c.bf16 %v1411, %v1409
        %v1448 = vpack.c.bf16 %v1414, %v1412
        %v1449 = vpack.c.bf16 %v1415, %v1413
        %v1450 = vpack.c.bf16 %v1418, %v1416
        %v1451 = vpack.c.bf16 %v1419, %v1417
        %v1452 = vld [vmem:[%s5] sm:$0xf]
        %v1453 = vld [vmem:[%s5 + $0x4] sm:$0xf]
        %v1454 = vld [vmem:[%s5 + $0x8] sm:$0xf]
        %v1455 = vld [vmem:[%s5 + $0xc] sm:$0xf]
        %v1456 = vld [vmem:[%s5 + $0x10] sm:$0xf]
        %v1457 = vld [vmem:[%s5 + $0x14] sm:$0xf]
        %v1458 = vld [vmem:[%s5 + $0x18] sm:$0xf]
        %v1459 = vld [vmem:[%s5 + $0x1c] sm:$0xf]
        %v1460 = vld [vmem:[%s5 + $0x20] sm:$0xf]
        %v1461 = vld [vmem:[%s5 + $0x24] sm:$0xf]
        %v1462 = vld [vmem:[%s5 + $0x28] sm:$0xf]
        %v1463 = vld [vmem:[%s5 + $0x2c] sm:$0xf]
        %v1464 = vld [vmem:[%s5 + $0x30] sm:$0xf]
        %v1465 = vld [vmem:[%s5 + $0x34] sm:$0xf]
        %v1466 = vld [vmem:[%s5 + $0x38] sm:$0xf]
        %v1467 = vld [vmem:[%s5 + $0x3c] sm:$0xf]
        %v1468 = vld [vmem:[%s5 + $0x40] sm:$0xf]
        %v1469 = vld [vmem:[%s5 + $0x44] sm:$0xf]
        %v1470 = vld [vmem:[%s5 + $0x48] sm:$0xf]
        %v1471 = vld [vmem:[%s5 + $0x4c] sm:$0xf]
        %v1472 = vld [vmem:[%s5 + $0x50] sm:$0xf]
        %v1473 = vld [vmem:[%s5 + $0x54] sm:$0xf]
        %v1474 = vld [vmem:[%s5 + $0x58] sm:$0xf]
        %v1475 = vld [vmem:[%s5 + $0x5c] sm:$0xf]
        %v1476 = vld [vmem:[%s5 + $0x60] sm:$0xf]
        %v1477 = vld [vmem:[%s5 + $0x64] sm:$0xf]
        %v1478 = vld [vmem:[%s5 + $0x68] sm:$0xf]
        %v1479 = vld [vmem:[%s5 + $0x6c] sm:$0xf]
        %v1480 = vld [vmem:[%s5 + $0x70] sm:$0xf]
        %v1481 = vld [vmem:[%s5 + $0x74] sm:$0xf]
        %v1482 = vld [vmem:[%s5 + $0x78] sm:$0xf]
        %v1483 = vld [vmem:[%s5 + $0x7c] sm:$0xf]
        %v1484 = vld [vmem:[%s6] sm:$0x1]
        %v1486 = vperm.slane %v1484, 0
        %v1520 = vunpack.c.l.b16 %v1452
        %v1521 = vunpack.c.l.b16 %v1453
        %v1522 = vunpack.c.l.b16 %v1454
        %v1523 = vunpack.c.l.b16 %v1455
        %v1524 = vunpack.c.l.b16 %v1456
        %v1525 = vunpack.c.l.b16 %v1457
        %v1526 = vunpack.c.l.b16 %v1458
        %v1527 = vunpack.c.l.b16 %v1459
        %v1528 = vunpack.c.l.b16 %v1460
        %v1529 = vunpack.c.l.b16 %v1461
        %v1530 = vunpack.c.l.b16 %v1462
        %v1531 = vunpack.c.l.b16 %v1463
        %v1532 = vunpack.c.l.b16 %v1464
        %v1533 = vunpack.c.l.b16 %v1465
        %v1534 = vunpack.c.l.b16 %v1466
        %v1535 = vunpack.c.l.b16 %v1467
        %v1536 = vunpack.c.l.b16 %v1468
        %v1537 = vunpack.c.l.b16 %v1469
        %v1538 = vunpack.c.l.b16 %v1470
        %v1539 = vunpack.c.l.b16 %v1471
        %v1540 = vunpack.c.l.b16 %v1472
        %v1541 = vunpack.c.l.b16 %v1473
        %v1542 = vunpack.c.l.b16 %v1474
        %v1543 = vunpack.c.l.b16 %v1475
        %v1544 = vunpack.c.l.b16 %v1476
        %v1545 = vunpack.c.l.b16 %v1477
        %v1546 = vunpack.c.l.b16 %v1478
        %v1547 = vunpack.c.l.b16 %v1479
        %v1548 = vunpack.c.l.b16 %v1480
        %v1549 = vunpack.c.l.b16 %v1481
        %v1550 = vunpack.c.l.b16 %v1482
        %v1551 = vunpack.c.l.b16 %v1483
        %v1552 = vpack.c.b16 %v1521, %v1520
        %v1553 = vpack.c.b16 %v1523, %v1522
        %v1554 = vpack.c.b16 %v1525, %v1524
        %v1555 = vpack.c.b16 %v1527, %v1526
        %v1556 = vpack.c.b16 %v1529, %v1528
        %v1557 = vpack.c.b16 %v1531, %v1530
        %v1558 = vpack.c.b16 %v1533, %v1532
        %v1559 = vpack.c.b16 %v1535, %v1534
        %v1560 = vpack.c.b16 %v1537, %v1536
        %v1561 = vpack.c.b16 %v1539, %v1538
        %v1562 = vpack.c.b16 %v1541, %v1540
        %v1563 = vpack.c.b16 %v1543, %v1542
        %v1564 = vpack.c.b16 %v1545, %v1544
        %v1565 = vpack.c.b16 %v1547, %v1546
        %v1566 = vpack.c.b16 %v1549, %v1548
        %v1567 = vpack.c.b16 %v1551, %v1550
        %1584 = vmatpush.bf16.msra.mxu0 %v1559
        %1585 = vmatpush.bf16.msra.mxu0 %v1558
        %1586 = vmatpush.bf16.msra.mxu0 %v1557
        %1587 = vmatpush.bf16.msra.mxu0 %v1556
        %1588 = vmatpush.bf16.msra.mxu0 %v1555
        %1589 = vmatpush.bf16.msra.mxu0 %v1554
        %1590 = vmatpush.bf16.msra.mxu0 %v1553
        %1591 = vmatpush.bf16.msra.mxu0 %v1552
        %1592 = vmatmul.bf16.gmra.mxu0 %v1420
        %v1593 = vpop.f32.mrf.mxu0
        %v1594 = vadd.f32 %v1486, %v1593
        %v1595 = vpop.f32.mrf.mxu0
        %v1596 = vadd.f32 %v1486, %v1595
        %1597 = vmatmul.bf16.gmra.mxu0 %v1422
        %v1598 = vpop.f32.mrf.mxu0
        %v1599 = vadd.f32 %v1486, %v1598
        %v1600 = vpop.f32.mrf.mxu0
        %v1601 = vadd.f32 %v1486, %v1600
        %1602 = vmatmul.bf16.gmra.mxu0 %v1424
        %v1603 = vpop.f32.mrf.mxu0
        %v1604 = vadd.f32 %v1486, %v1603
        %v1605 = vpop.f32.mrf.mxu0
        %v1606 = vadd.f32 %v1486, %v1605
        %1607 = vmatmul.bf16.gmra.mxu0 %v1426
        %v1608 = vpop.f32.mrf.mxu0
        %v1609 = vadd.f32 %v1486, %v1608
        %v1610 = vpop.f32.mrf.mxu0
        %v1611 = vadd.f32 %v1486, %v1610
        %1612 = vmatmul.bf16.gmra.mxu0 %v1428
        %v1613 = vpop.f32.mrf.mxu0
        %v1614 = vadd.f32 %v1486, %v1613
        %v1615 = vpop.f32.mrf.mxu0
        %v1616 = vadd.f32 %v1486, %v1615
        %1617 = vmatmul.bf16.gmra.mxu0 %v1430
        %v1618 = vpop.f32.mrf.mxu0
        %v1619 = vadd.f32 %v1486, %v1618
        %v1620 = vpop.f32.mrf.mxu0
        %v1621 = vadd.f32 %v1486, %v1620
        %1622 = vmatmul.bf16.gmra.mxu0 %v1432
        %v1623 = vpop.f32.mrf.mxu0
        %v1624 = vadd.f32 %v1486, %v1623
        %v1625 = vpop.f32.mrf.mxu0
        %v1626 = vadd.f32 %v1486, %v1625
        %1627 = vmatmul.bf16.gmra.mxu0 %v1434
        %v1628 = vpop.f32.mrf.mxu0
        %v1629 = vadd.f32 %v1486, %v1628
        %v1630 = vpop.f32.mrf.mxu0
        %v1631 = vadd.f32 %v1486, %v1630
        %1632 = vmatmul.bf16.gmra.mxu0 %v1436
        %v1633 = vpop.f32.mrf.mxu0
        %v1634 = vadd.f32 %v1486, %v1633
        %v1635 = vpop.f32.mrf.mxu0
        %v1636 = vadd.f32 %v1486, %v1635
        %1637 = vmatmul.bf16.gmra.mxu0 %v1438
        %v1638 = vpop.f32.mrf.mxu0
        %v1639 = vadd.f32 %v1486, %v1638
        %v1640 = vpop.f32.mrf.mxu0
        %v1641 = vadd.f32 %v1486, %v1640
        %1642 = vmatmul.bf16.gmra.mxu0 %v1440
        %v1643 = vpop.f32.mrf.mxu0
        %v1644 = vadd.f32 %v1486, %v1643
        %v1645 = vpop.f32.mrf.mxu0
        %v1646 = vadd.f32 %v1486, %v1645
        %1647 = vmatmul.bf16.gmra.mxu0 %v1442
        %v1648 = vpop.f32.mrf.mxu0
        %v1649 = vadd.f32 %v1486, %v1648
        %v1650 = vpop.f32.mrf.mxu0
        %v1651 = vadd.f32 %v1486, %v1650
        %1652 = vmatmul.bf16.gmra.mxu0 %v1444
        %v1653 = vpop.f32.mrf.mxu0
        %v1654 = vadd.f32 %v1486, %v1653
        %v1655 = vpop.f32.mrf.mxu0
        %v1656 = vadd.f32 %v1486, %v1655
        %1657 = vmatmul.bf16.gmra.mxu0 %v1446
        %v1658 = vpop.f32.mrf.mxu0
        %v1659 = vadd.f32 %v1486, %v1658
        %v1660 = vpop.f32.mrf.mxu0
        %v1661 = vadd.f32 %v1486, %v1660
        %1662 = vmatmul.bf16.gmra.mxu0 %v1448
        %v1663 = vpop.f32.mrf.mxu0
        %v1664 = vadd.f32 %v1486, %v1663
        %v1665 = vpop.f32.mrf.mxu0
        %v1666 = vadd.f32 %v1486, %v1665
        %1667 = vmatmul.bf16.gmra.mxu0 %v1450
        %v1668 = vpop.f32.mrf.mxu0
        %v1669 = vadd.f32 %v1486, %v1668
        %v1670 = vpop.f32.mrf.mxu0
        %v1671 = vadd.f32 %v1486, %v1670
        %1672 = vdwg.mxu0
        %1673 = vmatpush.bf16.msra.mxu0 %v1567
        %1674 = vmatpush.bf16.msra.mxu0 %v1566
        %1675 = vmatpush.bf16.msra.mxu0 %v1565
        %1676 = vmatpush.bf16.msra.mxu0 %v1564
        %1677 = vmatpush.bf16.msra.mxu0 %v1563
        %1678 = vmatpush.bf16.msra.mxu0 %v1562
        %1679 = vmatpush.bf16.msra.mxu0 %v1561
        %1680 = vmatpush.bf16.msra.mxu0 %v1560
        %1681 = vmatmul.bf16.gmra.mxu0 %v1421
        %v1682 = vpop.f32.mrf.mxu0
        %v1683 = vadd.f32 %v1594, %v1682
        %v1684 = vpop.f32.mrf.mxu0
        %v1685 = vadd.f32 %v1596, %v1684
        %1686 = vmatmul.bf16.gmra.mxu0 %v1423
        %v1687 = vpop.f32.mrf.mxu0
        %v1688 = vadd.f32 %v1599, %v1687
        %v1689 = vpop.f32.mrf.mxu0
        %v1690 = vadd.f32 %v1601, %v1689
        %1691 = vmatmul.bf16.gmra.mxu0 %v1425
        %v1692 = vpop.f32.mrf.mxu0
        %v1693 = vadd.f32 %v1604, %v1692
        %v1694 = vpop.f32.mrf.mxu0
        %v1695 = vadd.f32 %v1606, %v1694
        %1696 = vmatmul.bf16.gmra.mxu0 %v1427
        %v1697 = vpop.f32.mrf.mxu0
        %v1698 = vadd.f32 %v1609, %v1697
        %v1699 = vpop.f32.mrf.mxu0
        %v1700 = vadd.f32 %v1611, %v1699
        %1701 = vmatmul.bf16.gmra.mxu0 %v1429
        %v1702 = vpop.f32.mrf.mxu0
        %v1703 = vadd.f32 %v1614, %v1702
        %v1704 = vpop.f32.mrf.mxu0
        %v1705 = vadd.f32 %v1616, %v1704
        %1706 = vmatmul.bf16.gmra.mxu0 %v1431
        %v1707 = vpop.f32.mrf.mxu0
        %v1708 = vadd.f32 %v1619, %v1707
        %v1709 = vpop.f32.mrf.mxu0
        %v1710 = vadd.f32 %v1621, %v1709
        %1711 = vmatmul.bf16.gmra.mxu0 %v1433
        %v1712 = vpop.f32.mrf.mxu0
        %v1713 = vadd.f32 %v1624, %v1712
        %v1714 = vpop.f32.mrf.mxu0
        %v1715 = vadd.f32 %v1626, %v1714
        %1716 = vmatmul.bf16.gmra.mxu0 %v1435
        %v1717 = vpop.f32.mrf.mxu0
        %v1718 = vadd.f32 %v1629, %v1717
        %v1719 = vpop.f32.mrf.mxu0
        %v1720 = vadd.f32 %v1631, %v1719
        %1721 = vmatmul.bf16.gmra.mxu0 %v1437
        %v1722 = vpop.f32.mrf.mxu0
        %v1723 = vadd.f32 %v1634, %v1722
        %v1724 = vpop.f32.mrf.mxu0
        %v1725 = vadd.f32 %v1636, %v1724
        %1726 = vmatmul.bf16.gmra.mxu0 %v1439
        %v1727 = vpop.f32.mrf.mxu0
        %v1728 = vadd.f32 %v1639, %v1727
        %v1729 = vpop.f32.mrf.mxu0
        %v1730 = vadd.f32 %v1641, %v1729
        %1731 = vmatmul.bf16.gmra.mxu0 %v1441
        %v1732 = vpop.f32.mrf.mxu0
        %v1733 = vadd.f32 %v1644, %v1732
        %v1734 = vpop.f32.mrf.mxu0
        %v1735 = vadd.f32 %v1646, %v1734
        %1736 = vmatmul.bf16.gmra.mxu0 %v1443
        %v1737 = vpop.f32.mrf.mxu0
        %v1738 = vadd.f32 %v1649, %v1737
        %v1739 = vpop.f32.mrf.mxu0
        %v1740 = vadd.f32 %v1651, %v1739
        %1741 = vmatmul.bf16.gmra.mxu0 %v1445
        %v1742 = vpop.f32.mrf.mxu0
        %v1743 = vadd.f32 %v1654, %v1742
        %v1744 = vpop.f32.mrf.mxu0
        %v1745 = vadd.f32 %v1656, %v1744
        %1746 = vmatmul.bf16.gmra.mxu0 %v1447
        %v1747 = vpop.f32.mrf.mxu0
        %v1748 = vadd.f32 %v1659, %v1747
        %v1749 = vpop.f32.mrf.mxu0
        %v1750 = vadd.f32 %v1661, %v1749
        %1751 = vmatmul.bf16.gmra.mxu0 %v1449
        %v1752 = vpop.f32.mrf.mxu0
        %v1753 = vadd.f32 %v1664, %v1752
        %v1754 = vpop.f32.mrf.mxu0
        %v1755 = vadd.f32 %v1666, %v1754
        %1756 = vmatmul.bf16.gmra.mxu0 %v1451
        %v1757 = vpop.f32.mrf.mxu0
        %v1758 = vadd.f32 %v1669, %v1757
        %v1759 = vpop.f32.mrf.mxu0
        %v1760 = vadd.f32 %v1671, %v1759
        %1761 = vdwg.mxu0
        %1762 = vst [vmem:[%s304] sm:$0xff] %v1683
        %1763 = vst [vmem:[%s304 + $0x8] sm:$0xff] %v1685
        %1764 = vst [vmem:[%s304 + $0x10] sm:$0xff] %v1688
        %1765 = vst [vmem:[%s304 + $0x18] sm:$0xff] %v1690
        %1766 = vst [vmem:[%s304 + $0x20] sm:$0xff] %v1693
        %1767 = vst [vmem:[%s304 + $0x28] sm:$0xff] %v1695
        %1768 = vst [vmem:[%s304 + $0x30] sm:$0xff] %v1698
        %1769 = vst [vmem:[%s304 + $0x38] sm:$0xff] %v1700
        %1770 = vst [vmem:[%s304 + $0x40] sm:$0xff] %v1703
        %1771 = vst [vmem:[%s304 + $0x48] sm:$0xff] %v1705
        %1772 = vst [vmem:[%s304 + $0x50] sm:$0xff] %v1708
        %1773 = vst [vmem:[%s304 + $0x58] sm:$0xff] %v1710
        %1774 = vst [vmem:[%s304 + $0x60] sm:$0xff] %v1713
        %1775 = vst [vmem:[%s304 + $0x68] sm:$0xff] %v1715
        %1776 = vst [vmem:[%s304 + $0x70] sm:$0xff] %v1718
        %1777 = vst [vmem:[%s304 + $0x78] sm:$0xff] %v1720
        %1778 = vst [vmem:[%s304 + $0x80] sm:$0xff] %v1723
        %1779 = vst [vmem:[%s304 + $0x88] sm:$0xff] %v1725
        %1780 = vst [vmem:[%s304 + $0x90] sm:$0xff] %v1728
        %1781 = vst [vmem:[%s304 + $0x98] sm:$0xff] %v1730
        %1782 = vst [vmem:[%s304 + $0xa0] sm:$0xff] %v1733
        %1783 = vst [vmem:[%s304 + $0xa8] sm:$0xff] %v1735
        %1784 = vst [vmem:[%s304 + $0xb0] sm:$0xff] %v1738
        %1785 = vst [vmem:[%s304 + $0xb8] sm:$0xff] %v1740
        %1786 = vst [vmem:[%s304 + $0xc0] sm:$0xff] %v1743
        %1787 = vst [vmem:[%s304 + $0xc8] sm:$0xff] %v1745
        %1788 = vst [vmem:[%s304 + $0xd0] sm:$0xff] %v1748
        %1789 = vst [vmem:[%s304 + $0xd8] sm:$0xff] %v1750
        %1790 = vst [vmem:[%s304 + $0xe0] sm:$0xff] %v1753
        %1791 = vst [vmem:[%s304 + $0xe8] sm:$0xff] %v1755
        %1792 = vst [vmem:[%s304 + $0xf0] sm:$0xff] %v1758
        %1793 = vst [vmem:[%s304 + $0xf8] sm:$0xff] %v1760
        %s1794 = sand.u32 %s183, 1
        %s1795 = scalar_lea.sflag [#allocation4], %s1794
        %s1796 = sand.u32 %s183, 1
        %s1797 = smul.addr %s1796, 256
        %s1798 = scalar_lea.vmem [#allocation7], %s1797
        // Predicated region
        $region57: #{tpu_custom_call.1} parent=47 // pred_check
          %p1799 = pneg %p193
        $region58: #{tpu_custom_call.1} parent=47 // pred_check_branch
          %1801 = sbr.rel (%p1799) target = $region60
        $region59: #{tpu_custom_call.1} parent=47 // pred_region
          %s1802 = smul.u32 32, %s23
          %1804 = vsyncadd %s1795, 0
          %s1805 = smul.addr %s1802, 8
          %s1806 = scalar_lea.hbm %s7, %s1805
          %s1807 = sshll.u32 %s1798, 4
          %s1808 = int_to_ptr.vmem [resolvable:$true] %s1807
          %s1809 = sshll.u32 %s1806, 4
          %s1810 = int_to_ptr.hbm [resolvable:$true] %s1809
          %1815 = dma.vmem_to_hbm [thread:$0]  %s1808, 4096, %s1810, %s1795, 128, 128, 8
        $region60: #{tpu_custom_call.1} parent=47 // pred_fallthru
          _
      $region48: #{tpu_custom_call.1} parent=5 // pred_fallthru
        _
      %p1816 = scmp.le.s32.totalorder 2, %s18
      // Predicated region
      $region61: #{tpu_custom_call.1} parent=5 // pred_check
        %p1817 = pneg %p1816
      $region62: #{tpu_custom_call.1} parent=5 // pred_check_branch
        %1819 = sbr.rel (%p1817) target = $region64
      $region63: #{tpu_custom_call.1} parent=5 // pred_region
        %s1820 = ssub.s32 %s18, 2
        // Predicated region
        $region65: #{tpu_custom_call.1} parent=63 // pred_check
          %p1821 = pneg %p199
        $region66: #{tpu_custom_call.1} parent=63 // pred_check_branch
          %1823 = sbr.rel (%p1821) target = $region68
        $region67: #{tpu_custom_call.1} parent=63 // pred_region
          %s1824 = sand.u32 %s184, 1
          %s1825 = scalar_lea.sflag [#allocation4], %s1824
          %s1826 = sand.u32 %s184, 1
          %s1827 = smul.addr %s1826, 256
          %s1828 = scalar_lea.vmem [#allocation7], %s1827
          %1830 = dma.done %s1825, 4096
        $region68: #{tpu_custom_call.1} parent=63 // pred_fallthru
          _
      $region64: #{tpu_custom_call.1} parent=5 // pred_fallthru
        _
    $region6: #{tpu_custom_call.1} parent=1 // loop_footer
      %s22 = sadd.s32 1, %s18
    $region7: #{tpu_custom_call.1} parent=1 // loop_footer_branch
      %17 = sbr.rel target = $region3
    $region8: #{tpu_custom_call.1} parent=1 // loop_exit
      _
    %1831 = vsyncpa [#allocation3], 1
    %s1832 = scalar_lea.sflag [#allocation3], 1
    %1833 = vsyncpa %s1832, 1
    %1834 = vsyncpa [#allocation6], 1
    %1835 = vsyncpa [#allocation4], 1
    %s1836 = scalar_lea.sflag [#allocation4], 1
    %1837 = vsyncpa %s1836, 1

</llo_original>
